<compile_context>
chip_gen: v7x
topology: tpu7x:2x2x1
jax: 0.10.0
libtpu: 0.0.40
codegen_flags: <defaults>
</compile_context>

<pallas_src>
import math

import jax
import jax.numpy as jnp
import numpy as np
from jax import lax
from jax.experimental import pallas as pl
from jax.experimental.pallas import tpu as pltpu

D_MODEL = 32
NUM_HEADS = 4
HIDDEN = 64
SEQ = 8
BATCH = 2
HEAD_DIM = D_MODEL // NUM_HEADS
EPS = 1e-5
VMEM = pltpu.MemorySpace.VMEM


# --------------------------- in-kernel helpers -----------------------------
def _layernorm(x, g, b):
    mean = jnp.mean(x, axis=-1, keepdims=True)
    var = jnp.mean((x - mean) ** 2, axis=-1, keepdims=True)
    return (x - mean) * lax.rsqrt(var + EPS) * g + b


def _gelu_exact(x):
    # PyTorch nn.GELU() default = exact erf-based GELU
    return 0.5 * x * (1.0 + lax.erf(x * (1.0 / math.sqrt(2.0))))


def _dot_t(a, w):
    # a @ w.T without materializing a transpose; w is PyTorch Linear layout (out, in).
    return lax.dot_general(a, w, (((1,), (1,)), ((), ())),
                           preferred_element_type=jnp.float32)


# --------------------------- fused block kernel -----------------------------
def block_kernel(x_ref, g1_ref, b1_ref, wq_ref, bq_ref, wkv_ref, bkv_ref,
                 wo_ref, bo_ref, g2_ref, b2_ref, w1_ref, fb1_ref,
                 w2_ref, fb2_ref, o_ref, attn_scr):
    B, S, H, hd, D = BATCH, SEQ, NUM_HEADS, HEAD_DIM, D_MODEL
    scale = 1.0 / math.sqrt(hd)

    x = x_ref[...]                                       # (B*S, D), batch-major rows
    ln1 = _layernorm(x, g1_ref[...], b1_ref[...])

    # Q from the raw residual stream; K/V from norm1(x) (single packed matmul).
    q = _dot_t(x, wq_ref[...]) + bq_ref[...]             # (B*S, D)
    kv = _dot_t(ln1, wkv_ref[...]) + bkv_ref[...]        # (B*S, 2D)
    k = kv[:, :D]
    v = kv[:, D:]

    # Scaled-dot-product attention per (batch, head); all slices static,
    # head outputs written straight into a VMEM scratch in merged layout.
    for b in range(B):
        r0, r1 = b * S, (b + 1) * S
        for h in range(H):
            c0, c1 = h * hd, (h + 1) * hd
            qh = q[r0:r1, c0:c1] * scale                 # (S, hd)
            kh = k[r0:r1, c0:c1]
            vh = v[r0:r1, c0:c1]
            s = lax.dot_general(qh, kh, (((1,), (1,)), ((), ())),
                                preferred_element_type=jnp.float32)  # (S, S)
            m = jnp.max(s, axis=-1, keepdims=True)
            p = jnp.exp(s - m)
            l = jnp.sum(p, axis=-1, keepdims=True)
            o = jnp.dot(p, vh, preferred_element_type=jnp.float32)   # (S, hd)
            attn_scr[r0:r1, c0:c1] = o * pl.reciprocal(l, approx=True)

    # TODO(synk): nn.Dropout on attention weights / inside the FFN is identity in eval mode.
    attn = attn_scr[...]
    x1 = x + _dot_t(attn, wo_ref[...]) + bo_ref[...]     # residual 1
    ln2 = _layernorm(x1, g2_ref[...], b2_ref[...])
    h1 = _gelu_exact(_dot_t(ln2, w1_ref[...]) + fb1_ref[...])        # (B*S, HIDDEN)
    ff = _gelu_exact(_dot_t(h1, w2_ref[...]) + fb2_ref[...])         # (B*S, D)
    o_ref[...] = x1 + ff                                 # residual 2


# --------------------------- wrapper ---------------------------------------
def pack_params(p):
    """One-time packing outside the hot path (no per-call transposes/concats)."""
    row = lambda v: v.reshape(1, -1)
    return {
        'ln1_g': row(p['ln1_g']), 'ln1_b': row(p['ln1_b']),
        'ln2_g': row(p['ln2_g']), 'ln2_b': row(p['ln2_b']),
        'wq': p['wq'], 'bq': row(p['bq']),
        'wkv': jnp.concatenate([p['wk'], p['wv']], axis=0),          # (2D, D)
        'bkv': row(jnp.concatenate([p['bk'], p['bv']])),             # (1, 2D)
        'wo': p['wo'], 'bo': row(p['bo']),
        'w1': p['w1'], 'b1': row(p['b1']),
        'w2': p['w2'], 'b2': row(p['b2']),
    }


@jax.jit
def transformer_block(x, pp):
    S, B, D = x.shape
    xb = x.transpose(1, 0, 2).reshape(B * S, D)          # batch-major rows
    vmem = lambda: pl.BlockSpec(memory_space=VMEM)
    out2d = pl.pallas_call(
        block_kernel,
        out_shape=jax.ShapeDtypeStruct((B * S, D), jnp.float32),
        in_specs=[vmem() for _ in range(15)],
        out_specs=vmem(),
        scratch_shapes=[pltpu.VMEM((B * S, D), jnp.float32)],
    )(xb,
      pp['ln1_g'], pp['ln1_b'],
      pp['wq'], pp['bq'], pp['wkv'], pp['bkv'],
      pp['wo'], pp['bo'],
      pp['ln2_g'], pp['ln2_b'],
      pp['w1'], pp['b1'], pp['w2'], pp['b2'])
    return out2d.reshape(B, S, D).transpose(1, 0, 2)


# --------------------------- pure-JAX reference ----------------------------
def reference(x, p):
    S, B, D = x.shape
    H, hd = NUM_HEADS, HEAD_DIM

    def ln(v, g, b):
        m = v.mean(-1, keepdims=True)
        var = ((v - m) ** 2).mean(-1, keepdims=True)
        return (v - m) / jnp.sqrt(var + EPS) * g + b

    kv = ln(x, p['ln1_g'], p['ln1_b'])
    q = x @ p['wq'].T + p['bq']
    k = kv @ p['wk'].T + p['bk']
    v = kv @ p['wv'].T + p['bv']

    def heads(t):
        return t.reshape(S, B, H, hd).transpose(1, 2, 0, 3)

    qh, kh, vh = heads(q), heads(k), heads(v)
    s = jnp.einsum('bhqd,bhkd->bhqk', qh / math.sqrt(hd), kh)
    a = jax.nn.softmax(s, axis=-1)
    o = jnp.einsum('bhqk,bhkd->bhqd', a, vh)
    o = o.transpose(2, 0, 1, 3).reshape(S, B, D)
    o = o @ p['wo'].T + p['bo']
    x1 = x + o
    ln2 = ln(x1, p['ln2_g'], p['ln2_b'])
    gelu = lambda t: 0.5 * t * (1.0 + jax.scipy.special.erf(t / math.sqrt(2.0)))
    ff = gelu(gelu(ln2 @ p['w1'].T + p['b1']) @ p['w2'].T + p['b2'])
    return x1 + ff


def init_params(key):
    keys = jax.random.split(key, 12)
    f = jnp.float32
    nrm = lambda k, shape, s=0.1: (s * jax.random.normal(k, shape)).astype(f)
    return {
        'ln1_g': jnp.ones((D_MODEL,), f), 'ln1_b': jnp.zeros((D_MODEL,), f),
        'ln2_g': jnp.ones((D_MODEL,), f), 'ln2_b': jnp.zeros((D_MODEL,), f),
        'wq': nrm(keys[0], (D_MODEL, D_MODEL)), 'bq': nrm(keys[1], (D_MODEL,), 0.02),
        'wk': nrm(keys[2], (D_MODEL, D_MODEL)), 'bk': nrm(keys[3], (D_MODEL,), 0.02),
        'wv': nrm(keys[4], (D_MODEL, D_MODEL)), 'bv': nrm(keys[5], (D_MODEL,), 0.02),
        'wo': nrm(keys[6], (D_MODEL, D_MODEL)), 'bo': nrm(keys[7], (D_MODEL,), 0.02),
        'w1': nrm(keys[8], (HIDDEN, D_MODEL)),  'b1': nrm(keys[9], (HIDDEN,), 0.02),
        'w2': nrm(keys[10], (D_MODEL, HIDDEN)), 'b2': nrm(keys[11], (D_MODEL,), 0.02),
    }


if __name__ == "__main__":
    key = jax.random.PRNGKey(0)
    k_x, k_p = jax.random.split(key)
    params = init_params(k_p)
    x = jax.random.normal(k_x, (SEQ, BATCH, D_MODEL), dtype=jnp.float32)

    packed = pack_params(params)          # one-time weight packing
    out = transformer_block(x, packed)
    out = jax.block_until_ready(out)

    ref = jax.block_until_ready(reference(x, params))
    assert out.shape == (SEQ, BATCH, D_MODEL)
    np.testing.assert_allclose(np.asarray(out), np.asarray(ref),
                               rtol=2e-3, atol=2e-3)
    print("KERNEL_OK")
</pallas_src>

<mosaic_0001>
module attributes {stable_mosaic.version = 11 : i64} {
  func.func @block_kernel(%arg0: memref<16x32xf32, #tpu.memory_space<vmem>>, %arg1: memref<1x32xf32, #tpu.memory_space<vmem>>, %arg2: memref<1x32xf32, #tpu.memory_space<vmem>>, %arg3: memref<32x32xf32, #tpu.memory_space<vmem>>, %arg4: memref<1x32xf32, #tpu.memory_space<vmem>>, %arg5: memref<64x32xf32, #tpu.memory_space<vmem>>, %arg6: memref<1x64xf32, #tpu.memory_space<vmem>>, %arg7: memref<32x32xf32, #tpu.memory_space<vmem>>, %arg8: memref<1x32xf32, #tpu.memory_space<vmem>>, %arg9: memref<1x32xf32, #tpu.memory_space<vmem>>, %arg10: memref<1x32xf32, #tpu.memory_space<vmem>>, %arg11: memref<64x32xf32, #tpu.memory_space<vmem>>, %arg12: memref<1x64xf32, #tpu.memory_space<vmem>>, %arg13: memref<32x64xf32, #tpu.memory_space<vmem>>, %arg14: memref<1x32xf32, #tpu.memory_space<vmem>>, %arg15: memref<16x32xf32, #tpu.memory_space<vmem>>, %arg16: memref<16x32xf32, #tpu.memory_space<vmem>>) attributes {dimension_semantics = [], scalar_prefetch = 0 : i64, scratch_operands = 1 : i64, tpu.core_type = #tpu.core_type<tc>} {
    %c0 = arith.constant 0 : index
    %c0_0 = arith.constant 0 : index
    %0 = vector.load %arg0[%c0, %c0_0] : memref<16x32xf32, #tpu.memory_space<vmem>>, vector<16x32xf32>
    %c0_1 = arith.constant 0 : index
    %c0_2 = arith.constant 0 : index
    %1 = vector.load %arg1[%c0_1, %c0_2] : memref<1x32xf32, #tpu.memory_space<vmem>>, vector<1x32xf32>
    %c0_3 = arith.constant 0 : index
    %c0_4 = arith.constant 0 : index
    %2 = vector.load %arg2[%c0_3, %c0_4] : memref<1x32xf32, #tpu.memory_space<vmem>>, vector<1x32xf32>
    %cst = arith.constant dense<0.000000e+00> : vector<16xf32>
    %3 = vector.multi_reduction <add>, %0, %cst [1] : vector<16x32xf32> to vector<16xf32>
    %4 = vector.shape_cast %3 : vector<16xf32> to vector<16x1xf32>
    %cst_5 = arith.constant 3.200000e+01 : f32
    %5 = vector.broadcast %cst_5 : f32 to vector<16x1xf32>
    %6 = arith.divf %4, %5 : vector<16x1xf32>
    %7 = vector.broadcast %6 : vector<16x1xf32> to vector<16x32xf32>
    %8 = arith.subf %0, %7 : vector<16x32xf32>
    %9 = arith.mulf %8, %8 : vector<16x32xf32>
    %cst_6 = arith.constant dense<0.000000e+00> : vector<16xf32>
    %10 = vector.multi_reduction <add>, %9, %cst_6 [1] : vector<16x32xf32> to vector<16xf32>
    %11 = vector.shape_cast %10 : vector<16xf32> to vector<16x1xf32>
    %cst_7 = arith.constant 3.200000e+01 : f32
    %12 = vector.broadcast %cst_7 : f32 to vector<16x1xf32>
    %13 = arith.divf %11, %12 : vector<16x1xf32>
    %14 = vector.broadcast %6 : vector<16x1xf32> to vector<16x32xf32>
    %15 = arith.subf %0, %14 : vector<16x32xf32>
    %cst_8 = arith.constant 9.99999974E-6 : f32
    %16 = vector.broadcast %cst_8 : f32 to vector<16x1xf32>
    %17 = arith.addf %13, %16 : vector<16x1xf32>
    %18 = math.rsqrt %17 : vector<16x1xf32>
    %19 = vector.broadcast %18 : vector<16x1xf32> to vector<16x32xf32>
    %20 = arith.mulf %15, %19 : vector<16x32xf32>
    %21 = vector.broadcast %1 : vector<1x32xf32> to vector<16x32xf32>
    %22 = arith.mulf %20, %21 : vector<16x32xf32>
    %23 = vector.broadcast %2 : vector<1x32xf32> to vector<16x32xf32>
    %24 = arith.addf %22, %23 : vector<16x32xf32>
    %c0_9 = arith.constant 0 : index
    %c0_10 = arith.constant 0 : index
    %25 = vector.load %arg3[%c0_9, %c0_10] : memref<32x32xf32, #tpu.memory_space<vmem>>, vector<32x32xf32>
    %cst_11 = arith.constant dense<0.000000e+00> : vector<16x32xf32>
    %26 = tpu.matmul %0, %25, %cst_11 {dimension_numbers = #tpu.dot_dimension_numbers<[1], [1], [0], [0], [0, 0, 1, 0], [], []>} : vector<16x32xf32>, vector<32x32xf32>, vector<16x32xf32> -> vector<16x32xf32>
    %c0_12 = arith.constant 0 : index
    %c0_13 = arith.constant 0 : index
    %27 = vector.load %arg4[%c0_12, %c0_13] : memref<1x32xf32, #tpu.memory_space<vmem>>, vector<1x32xf32>
    %28 = vector.broadcast %27 : vector<1x32xf32> to vector<16x32xf32>
    %29 = arith.addf %26, %28 : vector<16x32xf32>
    %c0_14 = arith.constant 0 : index
    %c0_15 = arith.constant 0 : index
    %30 = vector.load %arg5[%c0_14, %c0_15] : memref<64x32xf32, #tpu.memory_space<vmem>>, vector<64x32xf32>
    %cst_16 = arith.constant dense<0.000000e+00> : vector<16x64xf32>
    %31 = tpu.matmul %24, %30, %cst_16 {dimension_numbers = #tpu.dot_dimension_numbers<[1], [1], [0], [0], [0, 0, 1, 0], [], []>} : vector<16x32xf32>, vector<64x32xf32>, vector<16x64xf32> -> vector<16x64xf32>
    %c0_17 = arith.constant 0 : index
    %c0_18 = arith.constant 0 : index
    %32 = vector.load %arg6[%c0_17, %c0_18] : memref<1x64xf32, #tpu.memory_space<vmem>>, vector<1x64xf32>
    %33 = vector.broadcast %32 : vector<1x64xf32> to vector<16x64xf32>
    %34 = arith.addf %31, %33 : vector<16x64xf32>
    %35 = vector.extract_strided_slice %34 {offsets = [0, 0], sizes = [16, 32], strides = [1, 1]} : vector<16x64xf32> to vector<16x32xf32>
    %36 = vector.extract_strided_slice %34 {offsets = [0, 32], sizes = [16, 32], strides = [1, 1]} : vector<16x64xf32> to vector<16x32xf32>
    %37 = vector.extract_strided_slice %29 {offsets = [0, 0], sizes = [8, 8], strides = [1, 1]} : vector<16x32xf32> to vector<8x8xf32>
    %cst_19 = arith.constant 0.353553385 : f32
    %38 = vector.broadcast %cst_19 : f32 to vector<8x8xf32>
    %39 = arith.mulf %37, %38 : vector<8x8xf32>
    %40 = vector.extract_strided_slice %35 {offsets = [0, 0], sizes = [8, 8], strides = [1, 1]} : vector<16x32xf32> to vector<8x8xf32>
    %41 = vector.extract_strided_slice %36 {offsets = [0, 0], sizes = [8, 8], strides = [1, 1]} : vector<16x32xf32> to vector<8x8xf32>
    %cst_20 = arith.constant dense<0.000000e+00> : vector<8x8xf32>
    %42 = tpu.matmul %39, %40, %cst_20 {dimension_numbers = #tpu.dot_dimension_numbers<[1], [1], [0], [0], [0, 0, 1, 0], [], []>} : vector<8x8xf32>, vector<8x8xf32>, vector<8x8xf32> -> vector<8x8xf32>
    %cst_21 = arith.constant dense<0xFF800000> : vector<8xf32>
    %43 = vector.multi_reduction <maximumf>, %42, %cst_21 [1] : vector<8x8xf32> to vector<8xf32>
    %44 = vector.shape_cast %43 : vector<8xf32> to vector<8x1xf32>
    %45 = vector.broadcast %44 : vector<8x1xf32> to vector<8x8xf32>
    %46 = arith.subf %42, %45 : vector<8x8xf32>
    %47 = math.exp %46 : vector<8x8xf32>
    %cst_22 = arith.constant dense<0.000000e+00> : vector<8xf32>
    %48 = vector.multi_reduction <add>, %47, %cst_22 [1] : vector<8x8xf32> to vector<8xf32>
    %49 = vector.shape_cast %48 : vector<8xf32> to vector<8x1xf32>
    %cst_23 = arith.constant dense<0.000000e+00> : vector<8x8xf32>
    %50 = tpu.matmul %47, %41, %cst_23 {dimension_numbers = #tpu.dot_dimension_numbers<[1], [0], [0], [1], [0, 0, 1, 1], [], []>} : vector<8x8xf32>, vector<8x8xf32>, vector<8x8xf32> -> vector<8x8xf32>
    %51 = tpu.reciprocal %49 {approx = true} : vector<8x1xf32> -> vector<8x1xf32>
    %52 = vector.broadcast %51 : vector<8x1xf32> to vector<8x8xf32>
    %53 = arith.mulf %50, %52 : vector<8x8xf32>
    %c0_24 = arith.constant 0 : index
    %c0_25 = arith.constant 0 : index
    %54 = vector.load %arg16[%c0_24, %c0_25] : memref<16x32xf32, #tpu.memory_space<vmem>>, vector<8x8xf32>
    tpu.vector_store %arg16[%c0_24, %c0_25], %53 {strides = array<i32>} : memref<16x32xf32, #tpu.memory_space<vmem>>, vector<8x8xf32>,
    %55 = vector.extract_strided_slice %29 {offsets = [0, 8], sizes = [8, 8], strides = [1, 1]} : vector<16x32xf32> to vector<8x8xf32>
    %cst_26 = arith.constant 0.353553385 : f32
    %56 = vector.broadcast %cst_26 : f32 to vector<8x8xf32>
    %57 = arith.mulf %55, %56 : vector<8x8xf32>
    %58 = vector.extract_strided_slice %35 {offsets = [0, 8], sizes = [8, 8], strides = [1, 1]} : vector<16x32xf32> to vector<8x8xf32>
    %59 = vector.extract_strided_slice %36 {offsets = [0, 8], sizes = [8, 8], strides = [1, 1]} : vector<16x32xf32> to vector<8x8xf32>
    %cst_27 = arith.constant dense<0.000000e+00> : vector<8x8xf32>
    %60 = tpu.matmul %57, %58, %cst_27 {dimension_numbers = #tpu.dot_dimension_numbers<[1], [1], [0], [0], [0, 0, 1, 0], [], []>} : vector<8x8xf32>, vector<8x8xf32>, vector<8x8xf32> -> vector<8x8xf32>
    %cst_28 = arith.constant dense<0xFF800000> : vector<8xf32>
    %61 = vector.multi_reduction <maximumf>, %60, %cst_28 [1] : vector<8x8xf32> to vector<8xf32>
    %62 = vector.shape_cast %61 : vector<8xf32> to vector<8x1xf32>
    %63 = vector.broadcast %62 : vector<8x1xf32> to vector<8x8xf32>
    %64 = arith.subf %60, %63 : vector<8x8xf32>
    %65 = math.exp %64 : vector<8x8xf32>
    %cst_29 = arith.constant dense<0.000000e+00> : vector<8xf32>
    %66 = vector.multi_reduction <add>, %65, %cst_29 [1] : vector<8x8xf32> to vector<8xf32>
    %67 = vector.shape_cast %66 : vector<8xf32> to vector<8x1xf32>
    %cst_30 = arith.constant dense<0.000000e+00> : vector<8x8xf32>
    %68 = tpu.matmul %65, %59, %cst_30 {dimension_numbers = #tpu.dot_dimension_numbers<[1], [0], [0], [1], [0, 0, 1, 1], [], []>} : vector<8x8xf32>, vector<8x8xf32>, vector<8x8xf32> -> vector<8x8xf32>
    %69 = tpu.reciprocal %67 {approx = true} : vector<8x1xf32> -> vector<8x1xf32>
    %70 = vector.broadcast %69 : vector<8x1xf32> to vector<8x8xf32>
    %71 = arith.mulf %68, %70 : vector<8x8xf32>
    %c0_31 = arith.constant 0 : index
    %c8 = arith.constant 8 : index
    %72 = vector.load %arg16[%c0_31, %c8] : memref<16x32xf32, #tpu.memory_space<vmem>>, vector<8x8xf32>
    tpu.vector_store %arg16[%c0_31, %c8], %71 {strides = array<i32>} : memref<16x32xf32, #tpu.memory_space<vmem>>, vector<8x8xf32>,
    %73 = vector.extract_strided_slice %29 {offsets = [0, 16], sizes = [8, 8], strides = [1, 1]} : vector<16x32xf32> to vector<8x8xf32>
    %cst_32 = arith.constant 0.353553385 : f32
    %74 = vector.broadcast %cst_32 : f32 to vector<8x8xf32>
    %75 = arith.mulf %73, %74 : vector<8x8xf32>
    %76 = vector.extract_strided_slice %35 {offsets = [0, 16], sizes = [8, 8], strides = [1, 1]} : vector<16x32xf32> to vector<8x8xf32>
    %77 = vector.extract_strided_slice %36 {offsets = [0, 16], sizes = [8, 8], strides = [1, 1]} : vector<16x32xf32> to vector<8x8xf32>
    %cst_33 = arith.constant dense<0.000000e+00> : vector<8x8xf32>
    %78 = tpu.matmul %75, %76, %cst_33 {dimension_numbers = #tpu.dot_dimension_numbers<[1], [1], [0], [0], [0, 0, 1, 0], [], []>} : vector<8x8xf32>, vector<8x8xf32>, vector<8x8xf32> -> vector<8x8xf32>
    %cst_34 = arith.constant dense<0xFF800000> : vector<8xf32>
    %79 = vector.multi_reduction <maximumf>, %78, %cst_34 [1] : vector<8x8xf32> to vector<8xf32>
    %80 = vector.shape_cast %79 : vector<8xf32> to vector<8x1xf32>
    %81 = vector.broadcast %80 : vector<8x1xf32> to vector<8x8xf32>
    %82 = arith.subf %78, %81 : vector<8x8xf32>
    %83 = math.exp %82 : vector<8x8xf32>
    %cst_35 = arith.constant dense<0.000000e+00> : vector<8xf32>
    %84 = vector.multi_reduction <add>, %83, %cst_35 [1] : vector<8x8xf32> to vector<8xf32>
    %85 = vector.shape_cast %84 : vector<8xf32> to vector<8x1xf32>
    %cst_36 = arith.constant dense<0.000000e+00> : vector<8x8xf32>
    %86 = tpu.matmul %83, %77, %cst_36 {dimension_numbers = #tpu.dot_dimension_numbers<[1], [0], [0], [1], [0, 0, 1, 1], [], []>} : vector<8x8xf32>, vector<8x8xf32>, vector<8x8xf32> -> vector<8x8xf32>
    %87 = tpu.reciprocal %85 {approx = true} : vector<8x1xf32> -> vector<8x1xf32>
    %88 = vector.broadcast %87 : vector<8x1xf32> to vector<8x8xf32>
    %89 = arith.mulf %86, %88 : vector<8x8xf32>
    %c0_37 = arith.constant 0 : index
    %c16 = arith.constant 16 : index
    %90 = vector.load %arg16[%c0_37, %c16] : memref<16x32xf32, #tpu.memory_space<vmem>>, vector<8x8xf32>
    tpu.vector_store %arg16[%c0_37, %c16], %89 {strides = array<i32>} : memref<16x32xf32, #tpu.memory_space<vmem>>, vector<8x8xf32>,
    %91 = vector.extract_strided_slice %29 {offsets = [0, 24], sizes = [8, 8], strides = [1, 1]} : vector<16x32xf32> to vector<8x8xf32>
    %cst_38 = arith.constant 0.353553385 : f32
    %92 = vector.broadcast %cst_38 : f32 to vector<8x8xf32>
    %93 = arith.mulf %91, %92 : vector<8x8xf32>
    %94 = vector.extract_strided_slice %35 {offsets = [0, 24], sizes = [8, 8], strides = [1, 1]} : vector<16x32xf32> to vector<8x8xf32>
    %95 = vector.extract_strided_slice %36 {offsets = [0, 24], sizes = [8, 8], strides = [1, 1]} : vector<16x32xf32> to vector<8x8xf32>
    %cst_39 = arith.constant dense<0.000000e+00> : vector<8x8xf32>
    %96 = tpu.matmul %93, %94, %cst_39 {dimension_numbers = #tpu.dot_dimension_numbers<[1], [1], [0], [0], [0, 0, 1, 0], [], []>} : vector<8x8xf32>, vector<8x8xf32>, vector<8x8xf32> -> vector<8x8xf32>
    %cst_40 = arith.constant dense<0xFF800000> : vector<8xf32>
    %97 = vector.multi_reduction <maximumf>, %96, %cst_40 [1] : vector<8x8xf32> to vector<8xf32>
    %98 = vector.shape_cast %97 : vector<8xf32> to vector<8x1xf32>
    %99 = vector.broadcast %98 : vector<8x1xf32> to vector<8x8xf32>
    %100 = arith.subf %96, %99 : vector<8x8xf32>
    %101 = math.exp %100 : vector<8x8xf32>
    %cst_41 = arith.constant dense<0.000000e+00> : vector<8xf32>
    %102 = vector.multi_reduction <add>, %101, %cst_41 [1] : vector<8x8xf32> to vector<8xf32>
    %103 = vector.shape_cast %102 : vector<8xf32> to vector<8x1xf32>
    %cst_42 = arith.constant dense<0.000000e+00> : vector<8x8xf32>
    %104 = tpu.matmul %101, %95, %cst_42 {dimension_numbers = #tpu.dot_dimension_numbers<[1], [0], [0], [1], [0, 0, 1, 1], [], []>} : vector<8x8xf32>, vector<8x8xf32>, vector<8x8xf32> -> vector<8x8xf32>
    %105 = tpu.reciprocal %103 {approx = true} : vector<8x1xf32> -> vector<8x1xf32>
    %106 = vector.broadcast %105 : vector<8x1xf32> to vector<8x8xf32>
    %107 = arith.mulf %104, %106 : vector<8x8xf32>
    %c0_43 = arith.constant 0 : index
    %c24 = arith.constant 24 : index
    %108 = vector.load %arg16[%c0_43, %c24] : memref<16x32xf32, #tpu.memory_space<vmem>>, vector<8x8xf32>
    tpu.vector_store %arg16[%c0_43, %c24], %107 {strides = array<i32>} : memref<16x32xf32, #tpu.memory_space<vmem>>, vector<8x8xf32>,
    %109 = vector.extract_strided_slice %29 {offsets = [8, 0], sizes = [8, 8], strides = [1, 1]} : vector<16x32xf32> to vector<8x8xf32>
    %cst_44 = arith.constant 0.353553385 : f32
    %110 = vector.broadcast %cst_44 : f32 to vector<8x8xf32>
    %111 = arith.mulf %109, %110 : vector<8x8xf32>
    %112 = vector.extract_strided_slice %35 {offsets = [8, 0], sizes = [8, 8], strides = [1, 1]} : vector<16x32xf32> to vector<8x8xf32>
    %113 = vector.extract_strided_slice %36 {offsets = [8, 0], sizes = [8, 8], strides = [1, 1]} : vector<16x32xf32> to vector<8x8xf32>
    %cst_45 = arith.constant dense<0.000000e+00> : vector<8x8xf32>
    %114 = tpu.matmul %111, %112, %cst_45 {dimension_numbers = #tpu.dot_dimension_numbers<[1], [1], [0], [0], [0, 0, 1, 0], [], []>} : vector<8x8xf32>, vector<8x8xf32>, vector<8x8xf32> -> vector<8x8xf32>
    %cst_46 = arith.constant dense<0xFF800000> : vector<8xf32>
    %115 = vector.multi_reduction <maximumf>, %114, %cst_46 [1] : vector<8x8xf32> to vector<8xf32>
    %116 = vector.shape_cast %115 : vector<8xf32> to vector<8x1xf32>
    %117 = vector.broadcast %116 : vector<8x1xf32> to vector<8x8xf32>
    %118 = arith.subf %114, %117 : vector<8x8xf32>
    %119 = math.exp %118 : vector<8x8xf32>
    %cst_47 = arith.constant dense<0.000000e+00> : vector<8xf32>
    %120 = vector.multi_reduction <add>, %119, %cst_47 [1] : vector<8x8xf32> to vector<8xf32>
    %121 = vector.shape_cast %120 : vector<8xf32> to vector<8x1xf32>
    %cst_48 = arith.constant dense<0.000000e+00> : vector<8x8xf32>
    %122 = tpu.matmul %119, %113, %cst_48 {dimension_numbers = #tpu.dot_dimension_numbers<[1], [0], [0], [1], [0, 0, 1, 1], [], []>} : vector<8x8xf32>, vector<8x8xf32>, vector<8x8xf32> -> vector<8x8xf32>
    %123 = tpu.reciprocal %121 {approx = true} : vector<8x1xf32> -> vector<8x1xf32>
    %124 = vector.broadcast %123 : vector<8x1xf32> to vector<8x8xf32>
    %125 = arith.mulf %122, %124 : vector<8x8xf32>
    %c8_49 = arith.constant 8 : index
    %c0_50 = arith.constant 0 : index
    %126 = vector.load %arg16[%c8_49, %c0_50] : memref<16x32xf32, #tpu.memory_space<vmem>>, vector<8x8xf32>
    tpu.vector_store %arg16[%c8_49, %c0_50], %125 {strides = array<i32>} : memref<16x32xf32, #tpu.memory_space<vmem>>, vector<8x8xf32>,
    %127 = vector.extract_strided_slice %29 {offsets = [8, 8], sizes = [8, 8], strides = [1, 1]} : vector<16x32xf32> to vector<8x8xf32>
    %cst_51 = arith.constant 0.353553385 : f32
    %128 = vector.broadcast %cst_51 : f32 to vector<8x8xf32>
    %129 = arith.mulf %127, %128 : vector<8x8xf32>
    %130 = vector.extract_strided_slice %35 {offsets = [8, 8], sizes = [8, 8], strides = [1, 1]} : vector<16x32xf32> to vector<8x8xf32>
    %131 = vector.extract_strided_slice %36 {offsets = [8, 8], sizes = [8, 8], strides = [1, 1]} : vector<16x32xf32> to vector<8x8xf32>
    %cst_52 = arith.constant dense<0.000000e+00> : vector<8x8xf32>
    %132 = tpu.matmul %129, %130, %cst_52 {dimension_numbers = #tpu.dot_dimension_numbers<[1], [1], [0], [0], [0, 0, 1, 0], [], []>} : vector<8x8xf32>, vector<8x8xf32>, vector<8x8xf32> -> vector<8x8xf32>
    %cst_53 = arith.constant dense<0xFF800000> : vector<8xf32>
    %133 = vector.multi_reduction <maximumf>, %132, %cst_53 [1] : vector<8x8xf32> to vector<8xf32>
    %134 = vector.shape_cast %133 : vector<8xf32> to vector<8x1xf32>
    %135 = vector.broadcast %134 : vector<8x1xf32> to vector<8x8xf32>
    %136 = arith.subf %132, %135 : vector<8x8xf32>
    %137 = math.exp %136 : vector<8x8xf32>
    %cst_54 = arith.constant dense<0.000000e+00> : vector<8xf32>
    %138 = vector.multi_reduction <add>, %137, %cst_54 [1] : vector<8x8xf32> to vector<8xf32>
    %139 = vector.shape_cast %138 : vector<8xf32> to vector<8x1xf32>
    %cst_55 = arith.constant dense<0.000000e+00> : vector<8x8xf32>
    %140 = tpu.matmul %137, %131, %cst_55 {dimension_numbers = #tpu.dot_dimension_numbers<[1], [0], [0], [1], [0, 0, 1, 1], [], []>} : vector<8x8xf32>, vector<8x8xf32>, vector<8x8xf32> -> vector<8x8xf32>
    %141 = tpu.reciprocal %139 {approx = true} : vector<8x1xf32> -> vector<8x1xf32>
    %142 = vector.broadcast %141 : vector<8x1xf32> to vector<8x8xf32>
    %143 = arith.mulf %140, %142 : vector<8x8xf32>
    %c8_56 = arith.constant 8 : index
    %c8_57 = arith.constant 8 : index
    %144 = vector.load %arg16[%c8_56, %c8_57] : memref<16x32xf32, #tpu.memory_space<vmem>>, vector<8x8xf32>
    tpu.vector_store %arg16[%c8_56, %c8_57], %143 {strides = array<i32>} : memref<16x32xf32, #tpu.memory_space<vmem>>, vector<8x8xf32>,
    %145 = vector.extract_strided_slice %29 {offsets = [8, 16], sizes = [8, 8], strides = [1, 1]} : vector<16x32xf32> to vector<8x8xf32>
    %cst_58 = arith.constant 0.353553385 : f32
    %146 = vector.broadcast %cst_58 : f32 to vector<8x8xf32>
    %147 = arith.mulf %145, %146 : vector<8x8xf32>
    %148 = vector.extract_strided_slice %35 {offsets = [8, 16], sizes = [8, 8], strides = [1, 1]} : vector<16x32xf32> to vector<8x8xf32>
    %149 = vector.extract_strided_slice %36 {offsets = [8, 16], sizes = [8, 8], strides = [1, 1]} : vector<16x32xf32> to vector<8x8xf32>
    %cst_59 = arith.constant dense<0.000000e+00> : vector<8x8xf32>
    %150 = tpu.matmul %147, %148, %cst_59 {dimension_numbers = #tpu.dot_dimension_numbers<[1], [1], [0], [0], [0, 0, 1, 0], [], []>} : vector<8x8xf32>, vector<8x8xf32>, vector<8x8xf32> -> vector<8x8xf32>
    %cst_60 = arith.constant dense<0xFF800000> : vector<8xf32>
    %151 = vector.multi_reduction <maximumf>, %150, %cst_60 [1] : vector<8x8xf32> to vector<8xf32>
    %152 = vector.shape_cast %151 : vector<8xf32> to vector<8x1xf32>
    %153 = vector.broadcast %152 : vector<8x1xf32> to vector<8x8xf32>
    %154 = arith.subf %150, %153 : vector<8x8xf32>
    %155 = math.exp %154 : vector<8x8xf32>
    %cst_61 = arith.constant dense<0.000000e+00> : vector<8xf32>
    %156 = vector.multi_reduction <add>, %155, %cst_61 [1] : vector<8x8xf32> to vector<8xf32>
    %157 = vector.shape_cast %156 : vector<8xf32> to vector<8x1xf32>
    %cst_62 = arith.constant dense<0.000000e+00> : vector<8x8xf32>
    %158 = tpu.matmul %155, %149, %cst_62 {dimension_numbers = #tpu.dot_dimension_numbers<[1], [0], [0], [1], [0, 0, 1, 1], [], []>} : vector<8x8xf32>, vector<8x8xf32>, vector<8x8xf32> -> vector<8x8xf32>
    %159 = tpu.reciprocal %157 {approx = true} : vector<8x1xf32> -> vector<8x1xf32>
    %160 = vector.broadcast %159 : vector<8x1xf32> to vector<8x8xf32>
    %161 = arith.mulf %158, %160 : vector<8x8xf32>
    %c8_63 = arith.constant 8 : index
    %c16_64 = arith.constant 16 : index
    %162 = vector.load %arg16[%c8_63, %c16_64] : memref<16x32xf32, #tpu.memory_space<vmem>>, vector<8x8xf32>
    tpu.vector_store %arg16[%c8_63, %c16_64], %161 {strides = array<i32>} : memref<16x32xf32, #tpu.memory_space<vmem>>, vector<8x8xf32>,
    %163 = vector.extract_strided_slice %29 {offsets = [8, 24], sizes = [8, 8], strides = [1, 1]} : vector<16x32xf32> to vector<8x8xf32>
    %cst_65 = arith.constant 0.353553385 : f32
    %164 = vector.broadcast %cst_65 : f32 to vector<8x8xf32>
    %165 = arith.mulf %163, %164 : vector<8x8xf32>
    %166 = vector.extract_strided_slice %35 {offsets = [8, 24], sizes = [8, 8], strides = [1, 1]} : vector<16x32xf32> to vector<8x8xf32>
    %167 = vector.extract_strided_slice %36 {offsets = [8, 24], sizes = [8, 8], strides = [1, 1]} : vector<16x32xf32> to vector<8x8xf32>
    %cst_66 = arith.constant dense<0.000000e+00> : vector<8x8xf32>
    %168 = tpu.matmul %165, %166, %cst_66 {dimension_numbers = #tpu.dot_dimension_numbers<[1], [1], [0], [0], [0, 0, 1, 0], [], []>} : vector<8x8xf32>, vector<8x8xf32>, vector<8x8xf32> -> vector<8x8xf32>
    %cst_67 = arith.constant dense<0xFF800000> : vector<8xf32>
    %169 = vector.multi_reduction <maximumf>, %168, %cst_67 [1] : vector<8x8xf32> to vector<8xf32>
    %170 = vector.shape_cast %169 : vector<8xf32> to vector<8x1xf32>
    %171 = vector.broadcast %170 : vector<8x1xf32> to vector<8x8xf32>
    %172 = arith.subf %168, %171 : vector<8x8xf32>
    %173 = math.exp %172 : vector<8x8xf32>
    %cst_68 = arith.constant dense<0.000000e+00> : vector<8xf32>
    %174 = vector.multi_reduction <add>, %173, %cst_68 [1] : vector<8x8xf32> to vector<8xf32>
    %175 = vector.shape_cast %174 : vector<8xf32> to vector<8x1xf32>
    %cst_69 = arith.constant dense<0.000000e+00> : vector<8x8xf32>
    %176 = tpu.matmul %173, %167, %cst_69 {dimension_numbers = #tpu.dot_dimension_numbers<[1], [0], [0], [1], [0, 0, 1, 1], [], []>} : vector<8x8xf32>, vector<8x8xf32>, vector<8x8xf32> -> vector<8x8xf32>
    %177 = tpu.reciprocal %175 {approx = true} : vector<8x1xf32> -> vector<8x1xf32>
    %178 = vector.broadcast %177 : vector<8x1xf32> to vector<8x8xf32>
    %179 = arith.mulf %176, %178 : vector<8x8xf32>
    %c8_70 = arith.constant 8 : index
    %c24_71 = arith.constant 24 : index
    %180 = vector.load %arg16[%c8_70, %c24_71] : memref<16x32xf32, #tpu.memory_space<vmem>>, vector<8x8xf32>
    tpu.vector_store %arg16[%c8_70, %c24_71], %179 {strides = array<i32>} : memref<16x32xf32, #tpu.memory_space<vmem>>, vector<8x8xf32>,
    %c0_72 = arith.constant 0 : index
    %c0_73 = arith.constant 0 : index
    %181 = vector.load %arg16[%c0_72, %c0_73] : memref<16x32xf32, #tpu.memory_space<vmem>>, vector<16x32xf32>
    %c0_74 = arith.constant 0 : index
    %c0_75 = arith.constant 0 : index
    %182 = vector.load %arg7[%c0_74, %c0_75] : memref<32x32xf32, #tpu.memory_space<vmem>>, vector<32x32xf32>
    %cst_76 = arith.constant dense<0.000000e+00> : vector<16x32xf32>
    %183 = tpu.matmul %181, %182, %cst_76 {dimension_numbers = #tpu.dot_dimension_numbers<[1], [1], [0], [0], [0, 0, 1, 0], [], []>} : vector<16x32xf32>, vector<32x32xf32>, vector<16x32xf32> -> vector<16x32xf32>
    %184 = arith.addf %0, %183 : vector<16x32xf32>
    %c0_77 = arith.constant 0 : index
    %c0_78 = arith.constant 0 : index
    %185 = vector.load %arg8[%c0_77, %c0_78] : memref<1x32xf32, #tpu.memory_space<vmem>>, vector<1x32xf32>
    %186 = vector.broadcast %185 : vector<1x32xf32> to vector<16x32xf32>
    %187 = arith.addf %184, %186 : vector<16x32xf32>
    %c0_79 = arith.constant 0 : index
    %c0_80 = arith.constant 0 : index
    %188 = vector.load %arg9[%c0_79, %c0_80] : memref<1x32xf32, #tpu.memory_space<vmem>>, vector<1x32xf32>
    %c0_81 = arith.constant 0 : index
    %c0_82 = arith.constant 0 : index
    %189 = vector.load %arg10[%c0_81, %c0_82] : memref<1x32xf32, #tpu.memory_space<vmem>>, vector<1x32xf32>
    %cst_83 = arith.constant dense<0.000000e+00> : vector<16xf32>
    %190 = vector.multi_reduction <add>, %187, %cst_83 [1] : vector<16x32xf32> to vector<16xf32>
    %191 = vector.shape_cast %190 : vector<16xf32> to vector<16x1xf32>
    %cst_84 = arith.constant 3.200000e+01 : f32
    %192 = vector.broadcast %cst_84 : f32 to vector<16x1xf32>
    %193 = arith.divf %191, %192 : vector<16x1xf32>
    %194 = vector.broadcast %193 : vector<16x1xf32> to vector<16x32xf32>
    %195 = arith.subf %187, %194 : vector<16x32xf32>
    %196 = arith.mulf %195, %195 : vector<16x32xf32>
    %cst_85 = arith.constant dense<0.000000e+00> : vector<16xf32>
    %197 = vector.multi_reduction <add>, %196, %cst_85 [1] : vector<16x32xf32> to vector<16xf32>
    %198 = vector.shape_cast %197 : vector<16xf32> to vector<16x1xf32>
    %cst_86 = arith.constant 3.200000e+01 : f32
    %199 = vector.broadcast %cst_86 : f32 to vector<16x1xf32>
    %200 = arith.divf %198, %199 : vector<16x1xf32>
    %201 = vector.broadcast %193 : vector<16x1xf32> to vector<16x32xf32>
    %202 = arith.subf %187, %201 : vector<16x32xf32>
    %cst_87 = arith.constant 9.99999974E-6 : f32
    %203 = vector.broadcast %cst_87 : f32 to vector<16x1xf32>
    %204 = arith.addf %200, %203 : vector<16x1xf32>
    %205 = math.rsqrt %204 : vector<16x1xf32>
    %206 = vector.broadcast %205 : vector<16x1xf32> to vector<16x32xf32>
    %207 = arith.mulf %202, %206 : vector<16x32xf32>
    %208 = vector.broadcast %188 : vector<1x32xf32> to vector<16x32xf32>
    %209 = arith.mulf %207, %208 : vector<16x32xf32>
    %210 = vector.broadcast %189 : vector<1x32xf32> to vector<16x32xf32>
    %211 = arith.addf %209, %210 : vector<16x32xf32>
    %c0_88 = arith.constant 0 : index
    %c0_89 = arith.constant 0 : index
    %212 = vector.load %arg11[%c0_88, %c0_89] : memref<64x32xf32, #tpu.memory_space<vmem>>, vector<64x32xf32>
    %cst_90 = arith.constant dense<0.000000e+00> : vector<16x64xf32>
    %213 = tpu.matmul %211, %212, %cst_90 {dimension_numbers = #tpu.dot_dimension_numbers<[1], [1], [0], [0], [0, 0, 1, 0], [], []>} : vector<16x32xf32>, vector<64x32xf32>, vector<16x64xf32> -> vector<16x64xf32>
    %c0_91 = arith.constant 0 : index
    %c0_92 = arith.constant 0 : index
    %214 = vector.load %arg12[%c0_91, %c0_92] : memref<1x64xf32, #tpu.memory_space<vmem>>, vector<1x64xf32>
    %215 = vector.broadcast %214 : vector<1x64xf32> to vector<16x64xf32>
    %216 = arith.addf %213, %215 : vector<16x64xf32>
    %cst_93 = arith.constant 5.000000e-01 : f32
    %217 = vector.broadcast %cst_93 : f32 to vector<16x64xf32>
    %218 = arith.mulf %217, %216 : vector<16x64xf32>
    %cst_94 = arith.constant 0.707106769 : f32
    %219 = vector.broadcast %cst_94 : f32 to vector<16x64xf32>
    %220 = arith.mulf %216, %219 : vector<16x64xf32>
    %221 = math.erf %220 : vector<16x64xf32>
    %cst_95 = arith.constant 1.000000e+00 : f32
    %222 = vector.broadcast %cst_95 : f32 to vector<16x64xf32>
    %223 = arith.addf %222, %221 : vector<16x64xf32>
    %224 = arith.mulf %218, %223 : vector<16x64xf32>
    %c0_96 = arith.constant 0 : index
    %c0_97 = arith.constant 0 : index
    %225 = vector.load %arg13[%c0_96, %c0_97] : memref<32x64xf32, #tpu.memory_space<vmem>>, vector<32x64xf32>
    %cst_98 = arith.constant dense<0.000000e+00> : vector<16x32xf32>
    %226 = tpu.matmul %224, %225, %cst_98 {dimension_numbers = #tpu.dot_dimension_numbers<[1], [1], [0], [0], [0, 0, 1, 0], [], []>} : vector<16x64xf32>, vector<32x64xf32>, vector<16x32xf32> -> vector<16x32xf32>
    %c0_99 = arith.constant 0 : index
    %c0_100 = arith.constant 0 : index
    %227 = vector.load %arg14[%c0_99, %c0_100] : memref<1x32xf32, #tpu.memory_space<vmem>>, vector<1x32xf32>
    %228 = vector.broadcast %227 : vector<1x32xf32> to vector<16x32xf32>
    %229 = arith.addf %226, %228 : vector<16x32xf32>
    %cst_101 = arith.constant 5.000000e-01 : f32
    %230 = vector.broadcast %cst_101 : f32 to vector<16x32xf32>
    %231 = arith.mulf %230, %229 : vector<16x32xf32>
    %cst_102 = arith.constant 0.707106769 : f32
    %232 = vector.broadcast %cst_102 : f32 to vector<16x32xf32>
    %233 = arith.mulf %229, %232 : vector<16x32xf32>
    %234 = math.erf %233 : vector<16x32xf32>
    %cst_103 = arith.constant 1.000000e+00 : f32
    %235 = vector.broadcast %cst_103 : f32 to vector<16x32xf32>
    %236 = arith.addf %235, %234 : vector<16x32xf32>
    %237 = arith.mulf %231, %236 : vector<16x32xf32>
    %238 = arith.addf %187, %237 : vector<16x32xf32>
    %c0_104 = arith.constant 0 : index
    %c0_105 = arith.constant 0 : index
    %239 = vector.load %arg15[%c0_104, %c0_105] : memref<16x32xf32, #tpu.memory_space<vmem>>, vector<16x32xf32>
    tpu.vector_store %arg15[%c0_104, %c0_105], %238 {strides = array<i32>} : memref<16x32xf32, #tpu.memory_space<vmem>>, vector<16x32xf32>,
    return
  }
}

</mosaic_0001>

<llo_original>
// kernel: transformer_block.1
$region0: #{transformer_block.1}
  #allocation0 [shape = 'u32[]', space=smem, size = 0x4, offset = 0x4, fixed_abs, tag = 'smem constant byte address 0x4 - core index']
  #allocation1 [shape = 'u32[144,128]{1,0:T(1,128)}', space=vmem, size = 0x12000, scoped, tag = 'internal scratch']
  #allocation2 [shape = 'f32[16,32]{1,0:T(8,128)}', space=vmem, size = 0x2000, scoped, tag = 'scratch operand']
  %s0 = inlined_call_operand.vmem [shape: f32[16,32], index: 0, kind: input, shape index: {}]
  %s1 = inlined_call_operand.vmem [shape: f32[1,32], index: 1, kind: input, shape index: {}]
  %s2 = inlined_call_operand.vmem [shape: f32[1,32], index: 2, kind: input, shape index: {}]
  %s3 = inlined_call_operand.vmem [shape: f32[32,32], index: 3, kind: input, shape index: {}]
  %s4 = inlined_call_operand.vmem [shape: f32[1,32], index: 4, kind: input, shape index: {}]
  %s5 = inlined_call_operand.vmem [shape: f32[64,32], index: 5, kind: input, shape index: {}]
  %s6 = inlined_call_operand.vmem [shape: f32[1,64], index: 6, kind: input, shape index: {}]
  %s7 = inlined_call_operand.vmem [shape: f32[32,32], index: 7, kind: input, shape index: {}]
  %s8 = inlined_call_operand.vmem [shape: f32[1,32], index: 8, kind: input, shape index: {}]
  %s9 = inlined_call_operand.vmem [shape: f32[1,32], index: 9, kind: input, shape index: {}]
  %s10 = inlined_call_operand.vmem [shape: f32[1,32], index: 10, kind: input, shape index: {}]
  %s11 = inlined_call_operand.vmem [shape: f32[64,32], index: 11, kind: input, shape index: {}]
  %s12 = inlined_call_operand.vmem [shape: f32[1,64], index: 12, kind: input, shape index: {}]
  %s13 = inlined_call_operand.vmem [shape: f32[32,64], index: 13, kind: input, shape index: {}]
  %s14 = inlined_call_operand.vmem [shape: f32[1,32], index: 14, kind: input, shape index: {}]
  %s15 = inlined_call_operand.vmem [shape: f32[16,32], index: 15, kind: output, shape index: {}]
  %s16 = sld [smem:[#allocation0]]
  $region70: #{transformer_block.1} parent=0
    _
  %s18 = ssub.s32 1, %s16
  %s19 = scalar_select 0, %s18, %s16
  // Predicated region
  $region2: #{transformer_block.1} parent=0 // pred_check
    _
  $region3: #{transformer_block.1} parent=0 // pred_check_branch
    %21 = sbr.rel (0) target = $region5
  $region4: #{transformer_block.1} parent=0 // pred_region
    _
  $region5: #{transformer_block.1} parent=0 // pred_fallthru
    _
  // Predicated region
  $region6: #{transformer_block.1} parent=0 // pred_check
    _
  $region7: #{transformer_block.1} parent=0 // pred_check_branch
    %23 = sbr.rel (0) target = $region9
  $region8: #{transformer_block.1} parent=0 // pred_region
    _
  $region9: #{transformer_block.1} parent=0 // pred_fallthru
    _
  // Predicated region
  $region10: #{transformer_block.1} parent=0 // pred_check
    _
  $region11: #{transformer_block.1} parent=0 // pred_check_branch
    %25 = sbr.rel (0) target = $region13
  $region12: #{transformer_block.1} parent=0 // pred_region
    _
  $region13: #{transformer_block.1} parent=0 // pred_fallthru
    _
  // Predicated region
  $region14: #{transformer_block.1} parent=0 // pred_check
    _
  $region15: #{transformer_block.1} parent=0 // pred_check_branch
    %27 = sbr.rel (0) target = $region17
  $region16: #{transformer_block.1} parent=0 // pred_region
    _
  $region17: #{transformer_block.1} parent=0 // pred_fallthru
    _
  // Predicated region
  $region18: #{transformer_block.1} parent=0 // pred_check
    _
  $region19: #{transformer_block.1} parent=0 // pred_check_branch
    %29 = sbr.rel (0) target = $region21
  $region20: #{transformer_block.1} parent=0 // pred_region
    _
  $region21: #{transformer_block.1} parent=0 // pred_fallthru
    _
  // Predicated region
  $region22: #{transformer_block.1} parent=0 // pred_check
    _
  $region23: #{transformer_block.1} parent=0 // pred_check_branch
    %31 = sbr.rel (0) target = $region25
  $region24: #{transformer_block.1} parent=0 // pred_region
    _
  $region25: #{transformer_block.1} parent=0 // pred_fallthru
    _
  // Predicated region
  $region26: #{transformer_block.1} parent=0 // pred_check
    _
  $region27: #{transformer_block.1} parent=0 // pred_check_branch
    %33 = sbr.rel (0) target = $region29
  $region28: #{transformer_block.1} parent=0 // pred_region
    _
  $region29: #{transformer_block.1} parent=0 // pred_fallthru
    _
  // Predicated region
  $region30: #{transformer_block.1} parent=0 // pred_check
    _
  $region31: #{transformer_block.1} parent=0 // pred_check_branch
    %35 = sbr.rel (0) target = $region33
  $region32: #{transformer_block.1} parent=0 // pred_region
    _
  $region33: #{transformer_block.1} parent=0 // pred_fallthru
    _
  // Predicated region
  $region34: #{transformer_block.1} parent=0 // pred_check
    _
  $region35: #{transformer_block.1} parent=0 // pred_check_branch
    %37 = sbr.rel (0) target = $region37
  $region36: #{transformer_block.1} parent=0 // pred_region
    _
  $region37: #{transformer_block.1} parent=0 // pred_fallthru
    _
  // Predicated region
  $region38: #{transformer_block.1} parent=0 // pred_check
    _
  $region39: #{transformer_block.1} parent=0 // pred_check_branch
    %39 = sbr.rel (0) target = $region41
  $region40: #{transformer_block.1} parent=0 // pred_region
    _
  $region41: #{transformer_block.1} parent=0 // pred_fallthru
    _
  // Predicated region
  $region42: #{transformer_block.1} parent=0 // pred_check
    _
  $region43: #{transformer_block.1} parent=0 // pred_check_branch
    %41 = sbr.rel (0) target = $region45
  $region44: #{transformer_block.1} parent=0 // pred_region
    _
  $region45: #{transformer_block.1} parent=0 // pred_fallthru
    _
  // Predicated region
  $region46: #{transformer_block.1} parent=0 // pred_check
    _
  $region47: #{transformer_block.1} parent=0 // pred_check_branch
    %43 = sbr.rel (0) target = $region49
  $region48: #{transformer_block.1} parent=0 // pred_region
    _
  $region49: #{transformer_block.1} parent=0 // pred_fallthru
    _
  // Predicated region
  $region50: #{transformer_block.1} parent=0 // pred_check
    _
  $region51: #{transformer_block.1} parent=0 // pred_check_branch
    %45 = sbr.rel (0) target = $region53
  $region52: #{transformer_block.1} parent=0 // pred_region
    _
  $region53: #{transformer_block.1} parent=0 // pred_fallthru
    _
  // Predicated region
  $region54: #{transformer_block.1} parent=0 // pred_check
    _
  $region55: #{transformer_block.1} parent=0 // pred_check_branch
    %47 = sbr.rel (0) target = $region57
  $region56: #{transformer_block.1} parent=0 // pred_region
    _
  $region57: #{transformer_block.1} parent=0 // pred_fallthru
    _
  // Predicated region
  $region58: #{transformer_block.1} parent=0 // pred_check
    _
  $region59: #{transformer_block.1} parent=0 // pred_check_branch
    %49 = sbr.rel (0) target = $region61
  $region60: #{transformer_block.1} parent=0 // pred_region
    _
  $region61: #{transformer_block.1} parent=0 // pred_fallthru
    _
  %v50 = vld [vmem:[%s0] sm:$0xff]
  %v51 = vld [vmem:[%s0 + $0x8] sm:$0xff]
  %v52 = vld [vmem:[%s1] sm:$0x1]
  %v53 = vld [vmem:[%s2] sm:$0x1]
  %vm54 = vcmask 261120
  %v55 = vsel %vm54, %v50, 0.0
  %56 = vadd.xlane.f32.xlu0 %v55
  %v57 = vpop.xlane.xlu0 %56
  %v58 = vsel %vm54, %v51, 0.0
  %59 = vadd.xlane.f32.xlu0 %v58
  %v60 = vpop.xlane.xlu0 %59
  %v61 = vrcp.pop 32.0
  %v62 = vmul.f32 %v57, %v61
  %v63 = vmul.f32 %v60, %v61
  %v64 = vsub.f32 %v50, %v62
  %v65 = vsub.f32 %v51, %v63
  %v66 = vmul.f32 %v64, %v64
  %v67 = vmul.f32 %v65, %v65
  %v68 = vsel %vm54, %v66, 0.0
  %69 = vadd.xlane.f32.xlu0 %v68
  %v70 = vpop.xlane.xlu0 %69
  %v71 = vsel %vm54, %v67, 0.0
  %72 = vadd.xlane.f32.xlu0 %v71
  %v73 = vpop.xlane.xlu0 %72
  %v74 = vmul.f32 %v70, %v61
  %v75 = vmul.f32 %v73, %v61
  %v76 = vadd.f32 %v74, 1e-05
  %v77 = vadd.f32 %v75, 1e-05
  %v78 = vrsqrt.pop %v76
  %v79 = vrsqrt.pop %v77
  %v80 = vmul.f32 %v64, %v78
  %v81 = vmul.f32 %v65, %v79
  %v83 = vlaneseq
  %v84 = vshrl.u32 %v83, 7
  %v85 = vsub.s32 0, %v84
  %v86 = vrot.slane %v52, %v85
  %v88 = vmul.f32 %v80, %v86
  %v89 = vmul.f32 %v81, %v86
  %v91 = vlaneseq
  %v92 = vshrl.u32 %v91, 7
  %v93 = vsub.s32 0, %v92
  %v94 = vrot.slane %v53, %v93
  %v96 = vadd.f32 %v88, %v94
  %v97 = vadd.f32 %v89, %v94
  %v98 = vld [vmem:[%s3] sm:$0xff]
  %v99 = vld [vmem:[%s3 + $0x8] sm:$0xff]
  %v100 = vld [vmem:[%s3 + $0x10] sm:$0xff]
  %v101 = vld [vmem:[%s3 + $0x18] sm:$0xff]
  %v102 = vld [vmem:[%s4] sm:$0x1]
  %v104 = vlaneseq
  %v105 = vshrl.u32 %v104, 7
  %v106 = vsub.s32 0, %v105
  %v107 = vrot.slane %v102, %v106
  %v110 = vsel %vm54, %v50, 0
  %v113 = vsel %vm54, %v51, 0
  %v116 = vsel %vm54, %v98, 0
  %v119 = vsel %vm54, %v99, 0
  %v122 = vsel %vm54, %v100, 0
  %v125 = vsel %vm54, %v101, 0
  %127 = vmatprep.subr.mxu0 0.0
  %128 = vmatpush1.xpose.msra.mxu0 %v116
  %129 = vmatprep.subr.mxu0 0.0
  %130 = vmatpush1.xpose.msra.mxu0 %v119
  %131 = vmatprep.subr.mxu0 0.0
  %132 = vmatpush1.xpose.msra.mxu0 %v122
  %133 = vmatprep.subr.mxu0 0.0
  %134 = vmatpush1.xpose.msra.mxu0 %v125
  %135 = vmatprep.subr.mxu0 0.0
  %136 = vmatpush1.xpose.msra.mxu0 0.0
  %137 = vmatprep.subr.mxu0 0.0
  %138 = vmatpush1.xpose.msra.mxu0 0.0
  %139 = vmatprep.subr.mxu0 0.0
  %140 = vmatpush1.xpose.msra.mxu0 0.0
  %141 = vmatprep.subr.mxu0 0.0
  %142 = vmatpush1.xpose.msra.mxu0 0.0
  %143 = vmatprep.subr.mxu0 0.0
  %144 = vmatpush1.xpose.msra.mxu0 0.0
  %145 = vmatprep.subr.mxu0 0.0
  %146 = vmatpush1.xpose.msra.mxu0 0.0
  %147 = vmatprep.subr.mxu0 0.0
  %148 = vmatpush1.xpose.msra.mxu0 0.0
  %149 = vmatprep.subr.mxu0 0.0
  %150 = vmatpush1.xpose.msra.mxu0 0.0
  %151 = vmatprep.subr.mxu0 0.0
  %152 = vmatpush1.xpose.msra.mxu0 0.0
  %153 = vmatprep.subr.mxu0 0.0
  %154 = vmatpush1.xpose.msra.mxu0 0.0
  %155 = vmatprep.subr.mxu0 0.0
  %156 = vmatpush1.xpose.msra.mxu0 0.0
  %157 = vmatprep.subr.mxu0 0.0
  %158 = vmatpush1.xpose.msra.mxu0 0.0
  %159 = vmatprep.subr.mxu0 0.0
  %160 = vmatpush1.xpose.msra.mxu0 0.0
  %161 = vmatprep.subr.mxu0 0.0
  %162 = vmatpush1.xpose.msra.mxu0 0.0
  %163 = vmatprep.subr.mxu0 0.0
  %164 = vmatpush1.xpose.msra.mxu0 0.0
  %165 = vmatprep.subr.mxu0 0.0
  %166 = vmatpush1.xpose.msra.mxu0 0.0
  %167 = vmatprep.subr.mxu0 0.0
  %168 = vmatpush1.xpose.msra.mxu0 0.0
  %169 = vmatprep.subr.mxu0 0.0
  %170 = vmatpush1.xpose.msra.mxu0 0.0
  %171 = vmatprep.subr.mxu0 0.0
  %172 = vmatpush1.xpose.msra.mxu0 0.0
  %173 = vmatprep.subr.mxu0 0.0
  %174 = vmatpush1.xpose.msra.mxu0 0.0
  %175 = vmatprep.subr.mxu0 0.0
  %176 = vmatpush1.xpose.msra.mxu0 0.0
  %177 = vmatprep.subr.mxu0 0.0
  %178 = vmatpush1.xpose.msra.mxu0 0.0
  %179 = vmatprep.subr.mxu0 0.0
  %180 = vmatpush1.xpose.msra.mxu0 0.0
  %181 = vmatprep.subr.mxu0 0.0
  %182 = vmatpush1.xpose.msra.mxu0 0.0
  %183 = vmatprep.subr.mxu0 0.0
  %184 = vmatpush1.xpose.msra.mxu0 0.0
  %185 = vmatprep.subr.mxu0 0.0
  %186 = vmatpush1.xpose.msra.mxu0 0.0
  %187 = vmatprep.subr.mxu0 0.0
  %188 = vmatpush1.xpose.msra.mxu0 0.0
  %189 = vmatprep.subr.mxu0 0.0
  %190 = vmatpush1.xpose.msra.mxu0 0.0
  %191 = vmatprep.mubr.f32.mxu0 0.0
  %192 = vmatmul.mubr.f32.gmra.mrb[0].mxu0 %v110
  %v193 = vpop.f32.mrb[0].mxu0
  %v194 = vadd.f32 %v107, %v193
  %v195 = vpop.f32.mrb[0].mxu0
  %196 = vmatprep.mubr.f32.mxu0 0.0
  %197 = vmatmul.mubr.f32.gmra.mrb[0].mxu0 %v113
  %v198 = vpop.f32.mrb[0].mxu0
  %v199 = vadd.f32 %v107, %v198
  %v200 = vpop.f32.mrb[0].mxu0
  %201 = vdwg.mxu0
  %v202 = vld [vmem:[%s5] sm:$0xff]
  %v203 = vld [vmem:[%s5 + $0x8] sm:$0xff]
  %v204 = vld [vmem:[%s5 + $0x10] sm:$0xff]
  %v205 = vld [vmem:[%s5 + $0x18] sm:$0xff]
  %v206 = vld [vmem:[%s5 + $0x20] sm:$0xff]
  %v207 = vld [vmem:[%s5 + $0x28] sm:$0xff]
  %v208 = vld [vmem:[%s5 + $0x30] sm:$0xff]
  %v209 = vld [vmem:[%s5 + $0x38] sm:$0xff]
  %v210 = vld [vmem:[%s6] sm:$0x1]
  %v212 = vlaneseq
  %v213 = vshrl.u32 %v212, 7
  %v214 = vsub.s32 0, %v213
  %v215 = vrot.slane %v210, %v214
  %v218 = vsel %vm54, %v96, 0
  %v221 = vsel %vm54, %v97, 0
  %v224 = vsel %vm54, %v202, 0
  %v227 = vsel %vm54, %v203, 0
  %v230 = vsel %vm54, %v204, 0
  %v233 = vsel %vm54, %v205, 0
  %v236 = vsel %vm54, %v206, 0
  %v239 = vsel %vm54, %v207, 0
  %v242 = vsel %vm54, %v208, 0
  %v245 = vsel %vm54, %v209, 0
  %247 = vmatprep.subr.mxu0 0.0
  %248 = vmatpush1.xpose.msra.mxu0 %v224
  %249 = vmatprep.subr.mxu0 0.0
  %250 = vmatpush1.xpose.msra.mxu0 %v227
  %251 = vmatprep.subr.mxu0 0.0
  %252 = vmatpush1.xpose.msra.mxu0 %v230
  %253 = vmatprep.subr.mxu0 0.0
  %254 = vmatpush1.xpose.msra.mxu0 %v233
  %255 = vmatprep.subr.mxu0 0.0
  %256 = vmatpush1.xpose.msra.mxu0 %v236
  %257 = vmatprep.subr.mxu0 0.0
  %258 = vmatpush1.xpose.msra.mxu0 %v239
  %259 = vmatprep.subr.mxu0 0.0
  %260 = vmatpush1.xpose.msra.mxu0 %v242
  %261 = vmatprep.subr.mxu0 0.0
  %262 = vmatpush1.xpose.msra.mxu0 %v245
  %263 = vmatprep.subr.mxu0 0.0
  %264 = vmatpush1.xpose.msra.mxu0 0.0
  %265 = vmatprep.subr.mxu0 0.0
  %266 = vmatpush1.xpose.msra.mxu0 0.0
  %267 = vmatprep.subr.mxu0 0.0
  %268 = vmatpush1.xpose.msra.mxu0 0.0
  %269 = vmatprep.subr.mxu0 0.0
  %270 = vmatpush1.xpose.msra.mxu0 0.0
  %271 = vmatprep.subr.mxu0 0.0
  %272 = vmatpush1.xpose.msra.mxu0 0.0
  %273 = vmatprep.subr.mxu0 0.0
  %274 = vmatpush1.xpose.msra.mxu0 0.0
  %275 = vmatprep.subr.mxu0 0.0
  %276 = vmatpush1.xpose.msra.mxu0 0.0
  %277 = vmatprep.subr.mxu0 0.0
  %278 = vmatpush1.xpose.msra.mxu0 0.0
  %279 = vmatprep.subr.mxu0 0.0
  %280 = vmatpush1.xpose.msra.mxu0 0.0
  %281 = vmatprep.subr.mxu0 0.0
  %282 = vmatpush1.xpose.msra.mxu0 0.0
  %283 = vmatprep.subr.mxu0 0.0
  %284 = vmatpush1.xpose.msra.mxu0 0.0
  %285 = vmatprep.subr.mxu0 0.0
  %286 = vmatpush1.xpose.msra.mxu0 0.0
  %287 = vmatprep.subr.mxu0 0.0
  %288 = vmatpush1.xpose.msra.mxu0 0.0
  %289 = vmatprep.subr.mxu0 0.0
  %290 = vmatpush1.xpose.msra.mxu0 0.0
  %291 = vmatprep.subr.mxu0 0.0
  %292 = vmatpush1.xpose.msra.mxu0 0.0
  %293 = vmatprep.subr.mxu0 0.0
  %294 = vmatpush1.xpose.msra.mxu0 0.0
  %295 = vmatprep.subr.mxu0 0.0
  %296 = vmatpush1.xpose.msra.mxu0 0.0
  %297 = vmatprep.subr.mxu0 0.0
  %298 = vmatpush1.xpose.msra.mxu0 0.0
  %299 = vmatprep.subr.mxu0 0.0
  %300 = vmatpush1.xpose.msra.mxu0 0.0
  %301 = vmatprep.subr.mxu0 0.0
  %302 = vmatpush1.xpose.msra.mxu0 0.0
  %303 = vmatprep.subr.mxu0 0.0
  %304 = vmatpush1.xpose.msra.mxu0 0.0
  %305 = vmatprep.subr.mxu0 0.0
  %306 = vmatpush1.xpose.msra.mxu0 0.0
  %307 = vmatprep.subr.mxu0 0.0
  %308 = vmatpush1.xpose.msra.mxu0 0.0
  %309 = vmatprep.subr.mxu0 0.0
  %310 = vmatpush1.xpose.msra.mxu0 0.0
  %311 = vmatprep.mubr.f32.mxu0 0.0
  %312 = vmatmul.mubr.f32.gmra.mrb[0].mxu0 %v218
  %v313 = vpop.f32.mrb[0].mxu0
  %v314 = vadd.f32 %v215, %v313
  %v315 = vpop.f32.mrb[0].mxu0
  %316 = vmatprep.mubr.f32.mxu0 0.0
  %317 = vmatmul.mubr.f32.gmra.mrb[0].mxu0 %v221
  %v318 = vpop.f32.mrb[0].mxu0
  %v319 = vadd.f32 %v215, %v318
  %v320 = vpop.f32.mrb[0].mxu0
  %321 = vdwg.mxu0
  %v322 = vmul.f32 %v194, 0.35355338
  %vm323 = vcmask 64512
  %v325 = vsel %vm323, %v322, 0
  %v328 = vsel %vm323, %v314, 0
  %330 = vmatprep.subr.mxu0 0.0
  %331 = vmatpush1.xpose.msra.mxu0 %v328
  %332 = vmatprep.subr.mxu0 0.0
  %333 = vmatpush1.xpose.msra.mxu0 0.0
  %334 = vmatprep.subr.mxu0 0.0
  %335 = vmatpush1.xpose.msra.mxu0 0.0
  %336 = vmatprep.subr.mxu0 0.0
  %337 = vmatpush1.xpose.msra.mxu0 0.0
  %338 = vmatprep.subr.mxu0 0.0
  %339 = vmatpush1.xpose.msra.mxu0 0.0
  %340 = vmatprep.subr.mxu0 0.0
  %341 = vmatpush1.xpose.msra.mxu0 0.0
  %342 = vmatprep.subr.mxu0 0.0
  %343 = vmatpush1.xpose.msra.mxu0 0.0
  %344 = vmatprep.subr.mxu0 0.0
  %345 = vmatpush1.xpose.msra.mxu0 0.0
  %346 = vmatprep.subr.mxu0 0.0
  %347 = vmatpush1.xpose.msra.mxu0 0.0
  %348 = vmatprep.subr.mxu0 0.0
  %349 = vmatpush1.xpose.msra.mxu0 0.0
  %350 = vmatprep.subr.mxu0 0.0
  %351 = vmatpush1.xpose.msra.mxu0 0.0
  %352 = vmatprep.subr.mxu0 0.0
  %353 = vmatpush1.xpose.msra.mxu0 0.0
  %354 = vmatprep.subr.mxu0 0.0
  %355 = vmatpush1.xpose.msra.mxu0 0.0
  %356 = vmatprep.subr.mxu0 0.0
  %357 = vmatpush1.xpose.msra.mxu0 0.0
  %358 = vmatprep.subr.mxu0 0.0
  %359 = vmatpush1.xpose.msra.mxu0 0.0
  %360 = vmatprep.subr.mxu0 0.0
  %361 = vmatpush1.xpose.msra.mxu0 0.0
  %362 = vmatprep.subr.mxu0 0.0
  %363 = vmatpush1.xpose.msra.mxu0 0.0
  %364 = vmatprep.subr.mxu0 0.0
  %365 = vmatpush1.xpose.msra.mxu0 0.0
  %366 = vmatprep.subr.mxu0 0.0
  %367 = vmatpush1.xpose.msra.mxu0 0.0
  %368 = vmatprep.subr.mxu0 0.0
  %369 = vmatpush1.xpose.msra.mxu0 0.0
  %370 = vmatprep.subr.mxu0 0.0
  %371 = vmatpush1.xpose.msra.mxu0 0.0
  %372 = vmatprep.subr.mxu0 0.0
  %373 = vmatpush1.xpose.msra.mxu0 0.0
  %374 = vmatprep.subr.mxu0 0.0
  %375 = vmatpush1.xpose.msra.mxu0 0.0
  %376 = vmatprep.subr.mxu0 0.0
  %377 = vmatpush1.xpose.msra.mxu0 0.0
  %378 = vmatprep.subr.mxu0 0.0
  %379 = vmatpush1.xpose.msra.mxu0 0.0
  %380 = vmatprep.subr.mxu0 0.0
  %381 = vmatpush1.xpose.msra.mxu0 0.0
  %382 = vmatprep.subr.mxu0 0.0
  %383 = vmatpush1.xpose.msra.mxu0 0.0
  %384 = vmatprep.subr.mxu0 0.0
  %385 = vmatpush1.xpose.msra.mxu0 0.0
  %386 = vmatprep.subr.mxu0 0.0
  %387 = vmatpush1.xpose.msra.mxu0 0.0
  %388 = vmatprep.subr.mxu0 0.0
  %389 = vmatpush1.xpose.msra.mxu0 0.0
  %390 = vmatprep.subr.mxu0 0.0
  %391 = vmatpush1.xpose.msra.mxu0 0.0
  %392 = vmatprep.subr.mxu0 0.0
  %393 = vmatpush1.xpose.msra.mxu0 0.0
  %394 = vmatprep.mubr.f32.mxu0 0.0
  %395 = vmatmul.mubr.f32.gmra.mrb[0].mxu0 %v325
  %v396 = vpop.f32.mrb[0].mxu0
  %v397 = vadd.f32 0.0, %v396
  %v398 = vpop.f32.mrb[0].mxu0
  %399 = vdwg.mxu0
  %v400 = vsel %vm323, %v397, -inf
  %401 = vmax.xlane.f32.xlu0 %v400
  %v402 = vpop.xlane.xlu0 %401
  %v403 = vsub.f32 %v397, %v402
  %v404 = vmul.f32 %v403, 1.442695
  %v405 = vpow.pop %v404
  %v406 = vsel %vm323, %v405, 0.0
  %407 = vadd.xlane.f32.xlu0 %v406
  %v408 = vpop.xlane.xlu0 %407
  %409 = vrot.lane.b32.xlu0 %v314, 96
  %v410 = vpop.permute.xlu0 %409
  %v413 = vsel %vm323, %v405, 0
  %415 = vmatprep.subr.mxu0 0.0
  %416 = vmatpush1.msra.mxu0 %v410
  %417 = vmatprep.subr.mxu0 0.0
  %418 = vmatpush1.msra.mxu0 0.0
  %419 = vmatprep.subr.mxu0 0.0
  %420 = vmatpush1.msra.mxu0 0.0
  %421 = vmatprep.subr.mxu0 0.0
  %422 = vmatpush1.msra.mxu0 0.0
  %423 = vmatprep.subr.mxu0 0.0
  %424 = vmatpush1.msra.mxu0 0.0
  %425 = vmatprep.subr.mxu0 0.0
  %426 = vmatpush1.msra.mxu0 0.0
  %427 = vmatprep.subr.mxu0 0.0
  %428 = vmatpush1.msra.mxu0 0.0
  %429 = vmatprep.subr.mxu0 0.0
  %430 = vmatpush1.msra.mxu0 0.0
  %431 = vmatprep.subr.mxu0 0.0
  %432 = vmatpush1.msra.mxu0 0.0
  %433 = vmatprep.subr.mxu0 0.0
  %434 = vmatpush1.msra.mxu0 0.0
  %435 = vmatprep.subr.mxu0 0.0
  %436 = vmatpush1.msra.mxu0 0.0
  %437 = vmatprep.subr.mxu0 0.0
  %438 = vmatpush1.msra.mxu0 0.0
  %439 = vmatprep.subr.mxu0 0.0
  %440 = vmatpush1.msra.mxu0 0.0
  %441 = vmatprep.subr.mxu0 0.0
  %442 = vmatpush1.msra.mxu0 0.0
  %443 = vmatprep.subr.mxu0 0.0
  %444 = vmatpush1.msra.mxu0 0.0
  %445 = vmatprep.subr.mxu0 0.0
  %446 = vmatpush1.msra.mxu0 0.0
  %447 = vmatprep.subr.mxu0 0.0
  %448 = vmatpush1.msra.mxu0 0.0
  %449 = vmatprep.subr.mxu0 0.0
  %450 = vmatpush1.msra.mxu0 0.0
  %451 = vmatprep.subr.mxu0 0.0
  %452 = vmatpush1.msra.mxu0 0.0
  %453 = vmatprep.subr.mxu0 0.0
  %454 = vmatpush1.msra.mxu0 0.0
  %455 = vmatprep.subr.mxu0 0.0
  %456 = vmatpush1.msra.mxu0 0.0
  %457 = vmatprep.subr.mxu0 0.0
  %458 = vmatpush1.msra.mxu0 0.0
  %459 = vmatprep.subr.mxu0 0.0
  %460 = vmatpush1.msra.mxu0 0.0
  %461 = vmatprep.subr.mxu0 0.0
  %462 = vmatpush1.msra.mxu0 0.0
  %463 = vmatprep.subr.mxu0 0.0
  %464 = vmatpush1.msra.mxu0 0.0
  %465 = vmatprep.subr.mxu0 0.0
  %466 = vmatpush1.msra.mxu0 0.0
  %467 = vmatprep.subr.mxu0 0.0
  %468 = vmatpush1.msra.mxu0 0.0
  %469 = vmatprep.subr.mxu0 0.0
  %470 = vmatpush1.msra.mxu0 0.0
  %471 = vmatprep.subr.mxu0 0.0
  %472 = vmatpush1.msra.mxu0 0.0
  %473 = vmatprep.subr.mxu0 0.0
  %474 = vmatpush1.msra.mxu0 0.0
  %475 = vmatprep.subr.mxu0 0.0
  %476 = vmatpush1.msra.mxu0 0.0
  %477 = vmatprep.subr.mxu0 0.0
  %478 = vmatpush1.msra.mxu0 0.0
  %479 = vmatprep.mubr.f32.mxu0 0.0
  %480 = vmatmul.mubr.f32.gmra.mrb[0].mxu0 %v413
  %v481 = vpop.f32.mrb[0].mxu0
  %v482 = vadd.f32 0.0, %v481
  %v483 = vpop.f32.mrb[0].mxu0
  %484 = vdwg.mxu0
  %v485 = vrcp.pop %v408
  %v486 = vmul.f32 %v482, %v485
  %487 = vst.msk [vmem:[#allocation2] sm:$0xff] %vm323, %v486
  %488 = vrot.lane.b32.xlu0 %v322, 120
  %v489 = vpop.permute.xlu0 %488
  %490 = vrot.lane.b32.xlu0 %v314, 120
  %v491 = vpop.permute.xlu0 %490
  %v492 = vsel %vm323, %v489, 0
  %v494 = vsel %vm323, %v491, 0
  %496 = vmatprep.subr.mxu0 0.0
  %497 = vmatpush1.xpose.msra.mxu0 %v494
  %498 = vmatprep.subr.mxu0 0.0
  %499 = vmatpush1.xpose.msra.mxu0 0.0
  %500 = vmatprep.subr.mxu0 0.0
  %501 = vmatpush1.xpose.msra.mxu0 0.0
  %502 = vmatprep.subr.mxu0 0.0
  %503 = vmatpush1.xpose.msra.mxu0 0.0
  %504 = vmatprep.subr.mxu0 0.0
  %505 = vmatpush1.xpose.msra.mxu0 0.0
  %506 = vmatprep.subr.mxu0 0.0
  %507 = vmatpush1.xpose.msra.mxu0 0.0
  %508 = vmatprep.subr.mxu0 0.0
  %509 = vmatpush1.xpose.msra.mxu0 0.0
  %510 = vmatprep.subr.mxu0 0.0
  %511 = vmatpush1.xpose.msra.mxu0 0.0
  %512 = vmatprep.subr.mxu0 0.0
  %513 = vmatpush1.xpose.msra.mxu0 0.0
  %514 = vmatprep.subr.mxu0 0.0
  %515 = vmatpush1.xpose.msra.mxu0 0.0
  %516 = vmatprep.subr.mxu0 0.0
  %517 = vmatpush1.xpose.msra.mxu0 0.0
  %518 = vmatprep.subr.mxu0 0.0
  %519 = vmatpush1.xpose.msra.mxu0 0.0
  %520 = vmatprep.subr.mxu0 0.0
  %521 = vmatpush1.xpose.msra.mxu0 0.0
  %522 = vmatprep.subr.mxu0 0.0
  %523 = vmatpush1.xpose.msra.mxu0 0.0
  %524 = vmatprep.subr.mxu0 0.0
  %525 = vmatpush1.xpose.msra.mxu0 0.0
  %526 = vmatprep.subr.mxu0 0.0
  %527 = vmatpush1.xpose.msra.mxu0 0.0
  %528 = vmatprep.subr.mxu0 0.0
  %529 = vmatpush1.xpose.msra.mxu0 0.0
  %530 = vmatprep.subr.mxu0 0.0
  %531 = vmatpush1.xpose.msra.mxu0 0.0
  %532 = vmatprep.subr.mxu0 0.0
  %533 = vmatpush1.xpose.msra.mxu0 0.0
  %534 = vmatprep.subr.mxu0 0.0
  %535 = vmatpush1.xpose.msra.mxu0 0.0
  %536 = vmatprep.subr.mxu0 0.0
  %537 = vmatpush1.xpose.msra.mxu0 0.0
  %538 = vmatprep.subr.mxu0 0.0
  %539 = vmatpush1.xpose.msra.mxu0 0.0
  %540 = vmatprep.subr.mxu0 0.0
  %541 = vmatpush1.xpose.msra.mxu0 0.0
  %542 = vmatprep.subr.mxu0 0.0
  %543 = vmatpush1.xpose.msra.mxu0 0.0
  %544 = vmatprep.subr.mxu0 0.0
  %545 = vmatpush1.xpose.msra.mxu0 0.0
  %546 = vmatprep.subr.mxu0 0.0
  %547 = vmatpush1.xpose.msra.mxu0 0.0
  %548 = vmatprep.subr.mxu0 0.0
  %549 = vmatpush1.xpose.msra.mxu0 0.0
  %550 = vmatprep.subr.mxu0 0.0
  %551 = vmatpush1.xpose.msra.mxu0 0.0
  %552 = vmatprep.subr.mxu0 0.0
  %553 = vmatpush1.xpose.msra.mxu0 0.0
  %554 = vmatprep.subr.mxu0 0.0
  %555 = vmatpush1.xpose.msra.mxu0 0.0
  %556 = vmatprep.subr.mxu0 0.0
  %557 = vmatpush1.xpose.msra.mxu0 0.0
  %558 = vmatprep.subr.mxu0 0.0
  %559 = vmatpush1.xpose.msra.mxu0 0.0
  %560 = vmatprep.mubr.f32.mxu0 0.0
  %561 = vmatmul.mubr.f32.gmra.mrb[0].mxu0 %v492
  %v562 = vpop.f32.mrb[0].mxu0
  %v563 = vadd.f32 0.0, %v562
  %v564 = vpop.f32.mrb[0].mxu0
  %565 = vdwg.mxu0
  %v566 = vsel %vm323, %v563, -inf
  %567 = vmax.xlane.f32.xlu0 %v566
  %v568 = vpop.xlane.xlu0 %567
  %v569 = vsub.f32 %v563, %v568
  %v570 = vmul.f32 %v569, 1.442695
  %v571 = vpow.pop %v570
  %v572 = vsel %vm323, %v571, 0.0
  %573 = vadd.xlane.f32.xlu0 %v572
  %v574 = vpop.xlane.xlu0 %573
  %575 = vrot.lane.b32.xlu0 %v314, 88
  %v576 = vpop.permute.xlu0 %575
  %v579 = vsel %vm323, %v571, 0
  %581 = vmatprep.subr.mxu0 0.0
  %582 = vmatpush1.msra.mxu0 %v576
  %583 = vmatprep.subr.mxu0 0.0
  %584 = vmatpush1.msra.mxu0 0.0
  %585 = vmatprep.subr.mxu0 0.0
  %586 = vmatpush1.msra.mxu0 0.0
  %587 = vmatprep.subr.mxu0 0.0
  %588 = vmatpush1.msra.mxu0 0.0
  %589 = vmatprep.subr.mxu0 0.0
  %590 = vmatpush1.msra.mxu0 0.0
  %591 = vmatprep.subr.mxu0 0.0
  %592 = vmatpush1.msra.mxu0 0.0
  %593 = vmatprep.subr.mxu0 0.0
  %594 = vmatpush1.msra.mxu0 0.0
  %595 = vmatprep.subr.mxu0 0.0
  %596 = vmatpush1.msra.mxu0 0.0
  %597 = vmatprep.subr.mxu0 0.0
  %598 = vmatpush1.msra.mxu0 0.0
  %599 = vmatprep.subr.mxu0 0.0
  %600 = vmatpush1.msra.mxu0 0.0
  %601 = vmatprep.subr.mxu0 0.0
  %602 = vmatpush1.msra.mxu0 0.0
  %603 = vmatprep.subr.mxu0 0.0
  %604 = vmatpush1.msra.mxu0 0.0
  %605 = vmatprep.subr.mxu0 0.0
  %606 = vmatpush1.msra.mxu0 0.0
  %607 = vmatprep.subr.mxu0 0.0
  %608 = vmatpush1.msra.mxu0 0.0
  %609 = vmatprep.subr.mxu0 0.0
  %610 = vmatpush1.msra.mxu0 0.0
  %611 = vmatprep.subr.mxu0 0.0
  %612 = vmatpush1.msra.mxu0 0.0
  %613 = vmatprep.subr.mxu0 0.0
  %614 = vmatpush1.msra.mxu0 0.0
  %615 = vmatprep.subr.mxu0 0.0
  %616 = vmatpush1.msra.mxu0 0.0
  %617 = vmatprep.subr.mxu0 0.0
  %618 = vmatpush1.msra.mxu0 0.0
  %619 = vmatprep.subr.mxu0 0.0
  %620 = vmatpush1.msra.mxu0 0.0
  %621 = vmatprep.subr.mxu0 0.0
  %622 = vmatpush1.msra.mxu0 0.0
  %623 = vmatprep.subr.mxu0 0.0
  %624 = vmatpush1.msra.mxu0 0.0
  %625 = vmatprep.subr.mxu0 0.0
  %626 = vmatpush1.msra.mxu0 0.0
  %627 = vmatprep.subr.mxu0 0.0
  %628 = vmatpush1.msra.mxu0 0.0
  %629 = vmatprep.subr.mxu0 0.0
  %630 = vmatpush1.msra.mxu0 0.0
  %631 = vmatprep.subr.mxu0 0.0
  %632 = vmatpush1.msra.mxu0 0.0
  %633 = vmatprep.subr.mxu0 0.0
  %634 = vmatpush1.msra.mxu0 0.0
  %635 = vmatprep.subr.mxu0 0.0
  %636 = vmatpush1.msra.mxu0 0.0
  %637 = vmatprep.subr.mxu0 0.0
  %638 = vmatpush1.msra.mxu0 0.0
  %639 = vmatprep.subr.mxu0 0.0
  %640 = vmatpush1.msra.mxu0 0.0
  %641 = vmatprep.subr.mxu0 0.0
  %642 = vmatpush1.msra.mxu0 0.0
  %643 = vmatprep.subr.mxu0 0.0
  %644 = vmatpush1.msra.mxu0 0.0
  %645 = vmatprep.mubr.f32.mxu0 0.0
  %646 = vmatmul.mubr.f32.gmra.mrb[0].mxu0 %v579
  %v647 = vpop.f32.mrb[0].mxu0
  %v648 = vadd.f32 0.0, %v647
  %v649 = vpop.f32.mrb[0].mxu0
  %650 = vdwg.mxu0
  %v651 = vrcp.pop %v574
  %v652 = vmul.f32 %v648, %v651
  %654 = vrot.lane.b32.xlu0 %v652, 8
  %v655 = vpop.permute.xlu0 %654
  %vm657 = vcmask 130112
  %658 = vst.msk [vmem:[#allocation2] sm:$0xff] %vm657, %v655
  %659 = vrot.lane.b32.xlu0 %v322, 112
  %v660 = vpop.permute.xlu0 %659
  %661 = vrot.lane.b32.xlu0 %v314, 112
  %v662 = vpop.permute.xlu0 %661
  %v663 = vsel %vm323, %v660, 0
  %v665 = vsel %vm323, %v662, 0
  %667 = vmatprep.subr.mxu0 0.0
  %668 = vmatpush1.xpose.msra.mxu0 %v665
  %669 = vmatprep.subr.mxu0 0.0
  %670 = vmatpush1.xpose.msra.mxu0 0.0
  %671 = vmatprep.subr.mxu0 0.0
  %672 = vmatpush1.xpose.msra.mxu0 0.0
  %673 = vmatprep.subr.mxu0 0.0
  %674 = vmatpush1.xpose.msra.mxu0 0.0
  %675 = vmatprep.subr.mxu0 0.0
  %676 = vmatpush1.xpose.msra.mxu0 0.0
  %677 = vmatprep.subr.mxu0 0.0
  %678 = vmatpush1.xpose.msra.mxu0 0.0
  %679 = vmatprep.subr.mxu0 0.0
  %680 = vmatpush1.xpose.msra.mxu0 0.0
  %681 = vmatprep.subr.mxu0 0.0
  %682 = vmatpush1.xpose.msra.mxu0 0.0
  %683 = vmatprep.subr.mxu0 0.0
  %684 = vmatpush1.xpose.msra.mxu0 0.0
  %685 = vmatprep.subr.mxu0 0.0
  %686 = vmatpush1.xpose.msra.mxu0 0.0
  %687 = vmatprep.subr.mxu0 0.0
  %688 = vmatpush1.xpose.msra.mxu0 0.0
  %689 = vmatprep.subr.mxu0 0.0
  %690 = vmatpush1.xpose.msra.mxu0 0.0
  %691 = vmatprep.subr.mxu0 0.0
  %692 = vmatpush1.xpose.msra.mxu0 0.0
  %693 = vmatprep.subr.mxu0 0.0
  %694 = vmatpush1.xpose.msra.mxu0 0.0
  %695 = vmatprep.subr.mxu0 0.0
  %696 = vmatpush1.xpose.msra.mxu0 0.0
  %697 = vmatprep.subr.mxu0 0.0
  %698 = vmatpush1.xpose.msra.mxu0 0.0
  %699 = vmatprep.subr.mxu0 0.0
  %700 = vmatpush1.xpose.msra.mxu0 0.0
  %701 = vmatprep.subr.mxu0 0.0
  %702 = vmatpush1.xpose.msra.mxu0 0.0
  %703 = vmatprep.subr.mxu0 0.0
  %704 = vmatpush1.xpose.msra.mxu0 0.0
  %705 = vmatprep.subr.mxu0 0.0
  %706 = vmatpush1.xpose.msra.mxu0 0.0
  %707 = vmatprep.subr.mxu0 0.0
  %708 = vmatpush1.xpose.msra.mxu0 0.0
  %709 = vmatprep.subr.mxu0 0.0
  %710 = vmatpush1.xpose.msra.mxu0 0.0
  %711 = vmatprep.subr.mxu0 0.0
  %712 = vmatpush1.xpose.msra.mxu0 0.0
  %713 = vmatprep.subr.mxu0 0.0
  %714 = vmatpush1.xpose.msra.mxu0 0.0
  %715 = vmatprep.subr.mxu0 0.0
  %716 = vmatpush1.xpose.msra.mxu0 0.0
  %717 = vmatprep.subr.mxu0 0.0
  %718 = vmatpush1.xpose.msra.mxu0 0.0
  %719 = vmatprep.subr.mxu0 0.0
  %720 = vmatpush1.xpose.msra.mxu0 0.0
  %721 = vmatprep.subr.mxu0 0.0
  %722 = vmatpush1.xpose.msra.mxu0 0.0
  %723 = vmatprep.subr.mxu0 0.0
  %724 = vmatpush1.xpose.msra.mxu0 0.0
  %725 = vmatprep.subr.mxu0 0.0
  %726 = vmatpush1.xpose.msra.mxu0 0.0
  %727 = vmatprep.subr.mxu0 0.0
  %728 = vmatpush1.xpose.msra.mxu0 0.0
  %729 = vmatprep.subr.mxu0 0.0
  %730 = vmatpush1.xpose.msra.mxu0 0.0
  %731 = vmatprep.mubr.f32.mxu0 0.0
  %732 = vmatmul.mubr.f32.gmra.mrb[0].mxu0 %v663
  %v733 = vpop.f32.mrb[0].mxu0
  %v734 = vadd.f32 0.0, %v733
  %v735 = vpop.f32.mrb[0].mxu0
  %736 = vdwg.mxu0
  %v737 = vsel %vm323, %v734, -inf
  %738 = vmax.xlane.f32.xlu0 %v737
  %v739 = vpop.xlane.xlu0 %738
  %v740 = vsub.f32 %v734, %v739
  %v741 = vmul.f32 %v740, 1.442695
  %v742 = vpow.pop %v741
  %v743 = vsel %vm323, %v742, 0.0
  %744 = vadd.xlane.f32.xlu0 %v743
  %v745 = vpop.xlane.xlu0 %744
  %746 = vrot.lane.b32.xlu0 %v314, 80
  %v747 = vpop.permute.xlu0 %746
  %v750 = vsel %vm323, %v742, 0
  %752 = vmatprep.subr.mxu0 0.0
  %753 = vmatpush1.msra.mxu0 %v747
  %754 = vmatprep.subr.mxu0 0.0
  %755 = vmatpush1.msra.mxu0 0.0
  %756 = vmatprep.subr.mxu0 0.0
  %757 = vmatpush1.msra.mxu0 0.0
  %758 = vmatprep.subr.mxu0 0.0
  %759 = vmatpush1.msra.mxu0 0.0
  %760 = vmatprep.subr.mxu0 0.0
  %761 = vmatpush1.msra.mxu0 0.0
  %762 = vmatprep.subr.mxu0 0.0
  %763 = vmatpush1.msra.mxu0 0.0
  %764 = vmatprep.subr.mxu0 0.0
  %765 = vmatpush1.msra.mxu0 0.0
  %766 = vmatprep.subr.mxu0 0.0
  %767 = vmatpush1.msra.mxu0 0.0
  %768 = vmatprep.subr.mxu0 0.0
  %769 = vmatpush1.msra.mxu0 0.0
  %770 = vmatprep.subr.mxu0 0.0
  %771 = vmatpush1.msra.mxu0 0.0
  %772 = vmatprep.subr.mxu0 0.0
  %773 = vmatpush1.msra.mxu0 0.0
  %774 = vmatprep.subr.mxu0 0.0
  %775 = vmatpush1.msra.mxu0 0.0
  %776 = vmatprep.subr.mxu0 0.0
  %777 = vmatpush1.msra.mxu0 0.0
  %778 = vmatprep.subr.mxu0 0.0
  %779 = vmatpush1.msra.mxu0 0.0
  %780 = vmatprep.subr.mxu0 0.0
  %781 = vmatpush1.msra.mxu0 0.0
  %782 = vmatprep.subr.mxu0 0.0
  %783 = vmatpush1.msra.mxu0 0.0
  %784 = vmatprep.subr.mxu0 0.0
  %785 = vmatpush1.msra.mxu0 0.0
  %786 = vmatprep.subr.mxu0 0.0
  %787 = vmatpush1.msra.mxu0 0.0
  %788 = vmatprep.subr.mxu0 0.0
  %789 = vmatpush1.msra.mxu0 0.0
  %790 = vmatprep.subr.mxu0 0.0
  %791 = vmatpush1.msra.mxu0 0.0
  %792 = vmatprep.subr.mxu0 0.0
  %793 = vmatpush1.msra.mxu0 0.0
  %794 = vmatprep.subr.mxu0 0.0
  %795 = vmatpush1.msra.mxu0 0.0
  %796 = vmatprep.subr.mxu0 0.0
  %797 = vmatpush1.msra.mxu0 0.0
  %798 = vmatprep.subr.mxu0 0.0
  %799 = vmatpush1.msra.mxu0 0.0
  %800 = vmatprep.subr.mxu0 0.0
  %801 = vmatpush1.msra.mxu0 0.0
  %802 = vmatprep.subr.mxu0 0.0
  %803 = vmatpush1.msra.mxu0 0.0
  %804 = vmatprep.subr.mxu0 0.0
  %805 = vmatpush1.msra.mxu0 0.0
  %806 = vmatprep.subr.mxu0 0.0
  %807 = vmatpush1.msra.mxu0 0.0
  %808 = vmatprep.subr.mxu0 0.0
  %809 = vmatpush1.msra.mxu0 0.0
  %810 = vmatprep.subr.mxu0 0.0
  %811 = vmatpush1.msra.mxu0 0.0
  %812 = vmatprep.subr.mxu0 0.0
  %813 = vmatpush1.msra.mxu0 0.0
  %814 = vmatprep.subr.mxu0 0.0
  %815 = vmatpush1.msra.mxu0 0.0
  %816 = vmatprep.mubr.f32.mxu0 0.0
  %817 = vmatmul.mubr.f32.gmra.mrb[0].mxu0 %v750
  %v818 = vpop.f32.mrb[0].mxu0
  %v819 = vadd.f32 0.0, %v818
  %v820 = vpop.f32.mrb[0].mxu0
  %821 = vdwg.mxu0
  %v822 = vrcp.pop %v745
  %v823 = vmul.f32 %v819, %v822
  %825 = vrot.lane.b32.xlu0 %v823, 16
  %v826 = vpop.permute.xlu0 %825
  %vm828 = vcmask 195712
  %829 = vst.msk [vmem:[#allocation2] sm:$0xff] %vm828, %v826
  %830 = vrot.lane.b32.xlu0 %v322, 104
  %v831 = vpop.permute.xlu0 %830
  %832 = vrot.lane.b32.xlu0 %v314, 104
  %v833 = vpop.permute.xlu0 %832
  %v834 = vsel %vm323, %v831, 0
  %v836 = vsel %vm323, %v833, 0
  %838 = vmatprep.subr.mxu0 0.0
  %839 = vmatpush1.xpose.msra.mxu0 %v836
  %840 = vmatprep.subr.mxu0 0.0
  %841 = vmatpush1.xpose.msra.mxu0 0.0
  %842 = vmatprep.subr.mxu0 0.0
  %843 = vmatpush1.xpose.msra.mxu0 0.0
  %844 = vmatprep.subr.mxu0 0.0
  %845 = vmatpush1.xpose.msra.mxu0 0.0
  %846 = vmatprep.subr.mxu0 0.0
  %847 = vmatpush1.xpose.msra.mxu0 0.0
  %848 = vmatprep.subr.mxu0 0.0
  %849 = vmatpush1.xpose.msra.mxu0 0.0
  %850 = vmatprep.subr.mxu0 0.0
  %851 = vmatpush1.xpose.msra.mxu0 0.0
  %852 = vmatprep.subr.mxu0 0.0
  %853 = vmatpush1.xpose.msra.mxu0 0.0
  %854 = vmatprep.subr.mxu0 0.0
  %855 = vmatpush1.xpose.msra.mxu0 0.0
  %856 = vmatprep.subr.mxu0 0.0
  %857 = vmatpush1.xpose.msra.mxu0 0.0
  %858 = vmatprep.subr.mxu0 0.0
  %859 = vmatpush1.xpose.msra.mxu0 0.0
  %860 = vmatprep.subr.mxu0 0.0
  %861 = vmatpush1.xpose.msra.mxu0 0.0
  %862 = vmatprep.subr.mxu0 0.0
  %863 = vmatpush1.xpose.msra.mxu0 0.0
  %864 = vmatprep.subr.mxu0 0.0
  %865 = vmatpush1.xpose.msra.mxu0 0.0
  %866 = vmatprep.subr.mxu0 0.0
  %867 = vmatpush1.xpose.msra.mxu0 0.0
  %868 = vmatprep.subr.mxu0 0.0
  %869 = vmatpush1.xpose.msra.mxu0 0.0
  %870 = vmatprep.subr.mxu0 0.0
  %871 = vmatpush1.xpose.msra.mxu0 0.0
  %872 = vmatprep.subr.mxu0 0.0
  %873 = vmatpush1.xpose.msra.mxu0 0.0
  %874 = vmatprep.subr.mxu0 0.0
  %875 = vmatpush1.xpose.msra.mxu0 0.0
  %876 = vmatprep.subr.mxu0 0.0
  %877 = vmatpush1.xpose.msra.mxu0 0.0
  %878 = vmatprep.subr.mxu0 0.0
  %879 = vmatpush1.xpose.msra.mxu0 0.0
  %880 = vmatprep.subr.mxu0 0.0
  %881 = vmatpush1.xpose.msra.mxu0 0.0
  %882 = vmatprep.subr.mxu0 0.0
  %883 = vmatpush1.xpose.msra.mxu0 0.0
  %884 = vmatprep.subr.mxu0 0.0
  %885 = vmatpush1.xpose.msra.mxu0 0.0
  %886 = vmatprep.subr.mxu0 0.0
  %887 = vmatpush1.xpose.msra.mxu0 0.0
  %888 = vmatprep.subr.mxu0 0.0
  %889 = vmatpush1.xpose.msra.mxu0 0.0
  %890 = vmatprep.subr.mxu0 0.0
  %891 = vmatpush1.xpose.msra.mxu0 0.0
  %892 = vmatprep.subr.mxu0 0.0
  %893 = vmatpush1.xpose.msra.mxu0 0.0
  %894 = vmatprep.subr.mxu0 0.0
  %895 = vmatpush1.xpose.msra.mxu0 0.0
  %896 = vmatprep.subr.mxu0 0.0
  %897 = vmatpush1.xpose.msra.mxu0 0.0
  %898 = vmatprep.subr.mxu0 0.0
  %899 = vmatpush1.xpose.msra.mxu0 0.0
  %900 = vmatprep.subr.mxu0 0.0
  %901 = vmatpush1.xpose.msra.mxu0 0.0
  %902 = vmatprep.mubr.f32.mxu0 0.0
  %903 = vmatmul.mubr.f32.gmra.mrb[0].mxu0 %v834
  %v904 = vpop.f32.mrb[0].mxu0
  %v905 = vadd.f32 0.0, %v904
  %v906 = vpop.f32.mrb[0].mxu0
  %907 = vdwg.mxu0
  %v908 = vsel %vm323, %v905, -inf
  %909 = vmax.xlane.f32.xlu0 %v908
  %v910 = vpop.xlane.xlu0 %909
  %v911 = vsub.f32 %v905, %v910
  %v912 = vmul.f32 %v911, 1.442695
  %v913 = vpow.pop %v912
  %v914 = vsel %vm323, %v913, 0.0
  %915 = vadd.xlane.f32.xlu0 %v914
  %v916 = vpop.xlane.xlu0 %915
  %917 = vrot.lane.b32.xlu0 %v314, 72
  %v918 = vpop.permute.xlu0 %917
  %v921 = vsel %vm323, %v913, 0
  %923 = vmatprep.subr.mxu0 0.0
  %924 = vmatpush1.msra.mxu0 %v918
  %925 = vmatprep.subr.mxu0 0.0
  %926 = vmatpush1.msra.mxu0 0.0
  %927 = vmatprep.subr.mxu0 0.0
  %928 = vmatpush1.msra.mxu0 0.0
  %929 = vmatprep.subr.mxu0 0.0
  %930 = vmatpush1.msra.mxu0 0.0
  %931 = vmatprep.subr.mxu0 0.0
  %932 = vmatpush1.msra.mxu0 0.0
  %933 = vmatprep.subr.mxu0 0.0
  %934 = vmatpush1.msra.mxu0 0.0
  %935 = vmatprep.subr.mxu0 0.0
  %936 = vmatpush1.msra.mxu0 0.0
  %937 = vmatprep.subr.mxu0 0.0
  %938 = vmatpush1.msra.mxu0 0.0
  %939 = vmatprep.subr.mxu0 0.0
  %940 = vmatpush1.msra.mxu0 0.0
  %941 = vmatprep.subr.mxu0 0.0
  %942 = vmatpush1.msra.mxu0 0.0
  %943 = vmatprep.subr.mxu0 0.0
  %944 = vmatpush1.msra.mxu0 0.0
  %945 = vmatprep.subr.mxu0 0.0
  %946 = vmatpush1.msra.mxu0 0.0
  %947 = vmatprep.subr.mxu0 0.0
  %948 = vmatpush1.msra.mxu0 0.0
  %949 = vmatprep.subr.mxu0 0.0
  %950 = vmatpush1.msra.mxu0 0.0
  %951 = vmatprep.subr.mxu0 0.0
  %952 = vmatpush1.msra.mxu0 0.0
  %953 = vmatprep.subr.mxu0 0.0
  %954 = vmatpush1.msra.mxu0 0.0
  %955 = vmatprep.subr.mxu0 0.0
  %956 = vmatpush1.msra.mxu0 0.0
  %957 = vmatprep.subr.mxu0 0.0
  %958 = vmatpush1.msra.mxu0 0.0
  %959 = vmatprep.subr.mxu0 0.0
  %960 = vmatpush1.msra.mxu0 0.0
  %961 = vmatprep.subr.mxu0 0.0
  %962 = vmatpush1.msra.mxu0 0.0
  %963 = vmatprep.subr.mxu0 0.0
  %964 = vmatpush1.msra.mxu0 0.0
  %965 = vmatprep.subr.mxu0 0.0
  %966 = vmatpush1.msra.mxu0 0.0
  %967 = vmatprep.subr.mxu0 0.0
  %968 = vmatpush1.msra.mxu0 0.0
  %969 = vmatprep.subr.mxu0 0.0
  %970 = vmatpush1.msra.mxu0 0.0
  %971 = vmatprep.subr.mxu0 0.0
  %972 = vmatpush1.msra.mxu0 0.0
  %973 = vmatprep.subr.mxu0 0.0
  %974 = vmatpush1.msra.mxu0 0.0
  %975 = vmatprep.subr.mxu0 0.0
  %976 = vmatpush1.msra.mxu0 0.0
  %977 = vmatprep.subr.mxu0 0.0
  %978 = vmatpush1.msra.mxu0 0.0
  %979 = vmatprep.subr.mxu0 0.0
  %980 = vmatpush1.msra.mxu0 0.0
  %981 = vmatprep.subr.mxu0 0.0
  %982 = vmatpush1.msra.mxu0 0.0
  %983 = vmatprep.subr.mxu0 0.0
  %984 = vmatpush1.msra.mxu0 0.0
  %985 = vmatprep.subr.mxu0 0.0
  %986 = vmatpush1.msra.mxu0 0.0
  %987 = vmatprep.mubr.f32.mxu0 0.0
  %988 = vmatmul.mubr.f32.gmra.mrb[0].mxu0 %v921
  %v989 = vpop.f32.mrb[0].mxu0
  %v990 = vadd.f32 0.0, %v989
  %v991 = vpop.f32.mrb[0].mxu0
  %992 = vdwg.mxu0
  %v993 = vrcp.pop %v916
  %v994 = vmul.f32 %v990, %v993
  %996 = vrot.lane.b32.xlu0 %v994, 24
  %v997 = vpop.permute.xlu0 %996
  %vm999 = vcmask 261312
  %1000 = vst.msk [vmem:[#allocation2] sm:$0xff] %vm999, %v997
  %v1001 = vmul.f32 %v199, 0.35355338
  %v1003 = vsel %vm323, %v1001, 0
  %v1006 = vsel %vm323, %v319, 0
  %1008 = vmatprep.subr.mxu0 0.0
  %1009 = vmatpush1.xpose.msra.mxu0 %v1006
  %1010 = vmatprep.subr.mxu0 0.0
  %1011 = vmatpush1.xpose.msra.mxu0 0.0
  %1012 = vmatprep.subr.mxu0 0.0
  %1013 = vmatpush1.xpose.msra.mxu0 0.0
  %1014 = vmatprep.subr.mxu0 0.0
  %1015 = vmatpush1.xpose.msra.mxu0 0.0
  %1016 = vmatprep.subr.mxu0 0.0
  %1017 = vmatpush1.xpose.msra.mxu0 0.0
  %1018 = vmatprep.subr.mxu0 0.0
  %1019 = vmatpush1.xpose.msra.mxu0 0.0
  %1020 = vmatprep.subr.mxu0 0.0
  %1021 = vmatpush1.xpose.msra.mxu0 0.0
  %1022 = vmatprep.subr.mxu0 0.0
  %1023 = vmatpush1.xpose.msra.mxu0 0.0
  %1024 = vmatprep.subr.mxu0 0.0
  %1025 = vmatpush1.xpose.msra.mxu0 0.0
  %1026 = vmatprep.subr.mxu0 0.0
  %1027 = vmatpush1.xpose.msra.mxu0 0.0
  %1028 = vmatprep.subr.mxu0 0.0
  %1029 = vmatpush1.xpose.msra.mxu0 0.0
  %1030 = vmatprep.subr.mxu0 0.0
  %1031 = vmatpush1.xpose.msra.mxu0 0.0
  %1032 = vmatprep.subr.mxu0 0.0
  %1033 = vmatpush1.xpose.msra.mxu0 0.0
  %1034 = vmatprep.subr.mxu0 0.0
  %1035 = vmatpush1.xpose.msra.mxu0 0.0
  %1036 = vmatprep.subr.mxu0 0.0
  %1037 = vmatpush1.xpose.msra.mxu0 0.0
  %1038 = vmatprep.subr.mxu0 0.0
  %1039 = vmatpush1.xpose.msra.mxu0 0.0
  %1040 = vmatprep.subr.mxu0 0.0
  %1041 = vmatpush1.xpose.msra.mxu0 0.0
  %1042 = vmatprep.subr.mxu0 0.0
  %1043 = vmatpush1.xpose.msra.mxu0 0.0
  %1044 = vmatprep.subr.mxu0 0.0
  %1045 = vmatpush1.xpose.msra.mxu0 0.0
  %1046 = vmatprep.subr.mxu0 0.0
  %1047 = vmatpush1.xpose.msra.mxu0 0.0
  %1048 = vmatprep.subr.mxu0 0.0
  %1049 = vmatpush1.xpose.msra.mxu0 0.0
  %1050 = vmatprep.subr.mxu0 0.0
  %1051 = vmatpush1.xpose.msra.mxu0 0.0
  %1052 = vmatprep.subr.mxu0 0.0
  %1053 = vmatpush1.xpose.msra.mxu0 0.0
  %1054 = vmatprep.subr.mxu0 0.0
  %1055 = vmatpush1.xpose.msra.mxu0 0.0
  %1056 = vmatprep.subr.mxu0 0.0
  %1057 = vmatpush1.xpose.msra.mxu0 0.0
  %1058 = vmatprep.subr.mxu0 0.0
  %1059 = vmatpush1.xpose.msra.mxu0 0.0
  %1060 = vmatprep.subr.mxu0 0.0
  %1061 = vmatpush1.xpose.msra.mxu0 0.0
  %1062 = vmatprep.subr.mxu0 0.0
  %1063 = vmatpush1.xpose.msra.mxu0 0.0
  %1064 = vmatprep.subr.mxu0 0.0
  %1065 = vmatpush1.xpose.msra.mxu0 0.0
  %1066 = vmatprep.subr.mxu0 0.0
  %1067 = vmatpush1.xpose.msra.mxu0 0.0
  %1068 = vmatprep.subr.mxu0 0.0
  %1069 = vmatpush1.xpose.msra.mxu0 0.0
  %1070 = vmatprep.subr.mxu0 0.0
  %1071 = vmatpush1.xpose.msra.mxu0 0.0
  %1072 = vmatprep.mubr.f32.mxu0 0.0
  %1073 = vmatmul.mubr.f32.gmra.mrb[0].mxu0 %v1003
  %v1074 = vpop.f32.mrb[0].mxu0
  %v1075 = vadd.f32 0.0, %v1074
  %v1076 = vpop.f32.mrb[0].mxu0
  %1077 = vdwg.mxu0
  %v1078 = vsel %vm323, %v1075, -inf
  %1079 = vmax.xlane.f32.xlu0 %v1078
  %v1080 = vpop.xlane.xlu0 %1079
  %v1081 = vsub.f32 %v1075, %v1080
  %v1082 = vmul.f32 %v1081, 1.442695
  %v1083 = vpow.pop %v1082
  %v1084 = vsel %vm323, %v1083, 0.0
  %1085 = vadd.xlane.f32.xlu0 %v1084
  %v1086 = vpop.xlane.xlu0 %1085
  %1087 = vrot.lane.b32.xlu0 %v319, 96
  %v1088 = vpop.permute.xlu0 %1087
  %v1091 = vsel %vm323, %v1083, 0
  %1093 = vmatprep.subr.mxu0 0.0
  %1094 = vmatpush1.msra.mxu0 %v1088
  %1095 = vmatprep.subr.mxu0 0.0
  %1096 = vmatpush1.msra.mxu0 0.0
  %1097 = vmatprep.subr.mxu0 0.0
  %1098 = vmatpush1.msra.mxu0 0.0
  %1099 = vmatprep.subr.mxu0 0.0
  %1100 = vmatpush1.msra.mxu0 0.0
  %1101 = vmatprep.subr.mxu0 0.0
  %1102 = vmatpush1.msra.mxu0 0.0
  %1103 = vmatprep.subr.mxu0 0.0
  %1104 = vmatpush1.msra.mxu0 0.0
  %1105 = vmatprep.subr.mxu0 0.0
  %1106 = vmatpush1.msra.mxu0 0.0
  %1107 = vmatprep.subr.mxu0 0.0
  %1108 = vmatpush1.msra.mxu0 0.0
  %1109 = vmatprep.subr.mxu0 0.0
  %1110 = vmatpush1.msra.mxu0 0.0
  %1111 = vmatprep.subr.mxu0 0.0
  %1112 = vmatpush1.msra.mxu0 0.0
  %1113 = vmatprep.subr.mxu0 0.0
  %1114 = vmatpush1.msra.mxu0 0.0
  %1115 = vmatprep.subr.mxu0 0.0
  %1116 = vmatpush1.msra.mxu0 0.0
  %1117 = vmatprep.subr.mxu0 0.0
  %1118 = vmatpush1.msra.mxu0 0.0
  %1119 = vmatprep.subr.mxu0 0.0
  %1120 = vmatpush1.msra.mxu0 0.0
  %1121 = vmatprep.subr.mxu0 0.0
  %1122 = vmatpush1.msra.mxu0 0.0
  %1123 = vmatprep.subr.mxu0 0.0
  %1124 = vmatpush1.msra.mxu0 0.0
  %1125 = vmatprep.subr.mxu0 0.0
  %1126 = vmatpush1.msra.mxu0 0.0
  %1127 = vmatprep.subr.mxu0 0.0
  %1128 = vmatpush1.msra.mxu0 0.0
  %1129 = vmatprep.subr.mxu0 0.0
  %1130 = vmatpush1.msra.mxu0 0.0
  %1131 = vmatprep.subr.mxu0 0.0
  %1132 = vmatpush1.msra.mxu0 0.0
  %1133 = vmatprep.subr.mxu0 0.0
  %1134 = vmatpush1.msra.mxu0 0.0
  %1135 = vmatprep.subr.mxu0 0.0
  %1136 = vmatpush1.msra.mxu0 0.0
  %1137 = vmatprep.subr.mxu0 0.0
  %1138 = vmatpush1.msra.mxu0 0.0
  %1139 = vmatprep.subr.mxu0 0.0
  %1140 = vmatpush1.msra.mxu0 0.0
  %1141 = vmatprep.subr.mxu0 0.0
  %1142 = vmatpush1.msra.mxu0 0.0
  %1143 = vmatprep.subr.mxu0 0.0
  %1144 = vmatpush1.msra.mxu0 0.0
  %1145 = vmatprep.subr.mxu0 0.0
  %1146 = vmatpush1.msra.mxu0 0.0
  %1147 = vmatprep.subr.mxu0 0.0
  %1148 = vmatpush1.msra.mxu0 0.0
  %1149 = vmatprep.subr.mxu0 0.0
  %1150 = vmatpush1.msra.mxu0 0.0
  %1151 = vmatprep.subr.mxu0 0.0
  %1152 = vmatpush1.msra.mxu0 0.0
  %1153 = vmatprep.subr.mxu0 0.0
  %1154 = vmatpush1.msra.mxu0 0.0
  %1155 = vmatprep.subr.mxu0 0.0
  %1156 = vmatpush1.msra.mxu0 0.0
  %1157 = vmatprep.mubr.f32.mxu0 0.0
  %1158 = vmatmul.mubr.f32.gmra.mrb[0].mxu0 %v1091
  %v1159 = vpop.f32.mrb[0].mxu0
  %v1160 = vadd.f32 0.0, %v1159
  %v1161 = vpop.f32.mrb[0].mxu0
  %1162 = vdwg.mxu0
  %v1163 = vrcp.pop %v1086
  %v1164 = vmul.f32 %v1160, %v1163
  %1165 = vst.msk [vmem:[#allocation2 + $0x8] sm:$0xff] %vm323, %v1164
  %1166 = vrot.lane.b32.xlu0 %v1001, 120
  %v1167 = vpop.permute.xlu0 %1166
  %1168 = vrot.lane.b32.xlu0 %v319, 120
  %v1169 = vpop.permute.xlu0 %1168
  %v1170 = vsel %vm323, %v1167, 0
  %v1172 = vsel %vm323, %v1169, 0
  %1174 = vmatprep.subr.mxu0 0.0
  %1175 = vmatpush1.xpose.msra.mxu0 %v1172
  %1176 = vmatprep.subr.mxu0 0.0
  %1177 = vmatpush1.xpose.msra.mxu0 0.0
  %1178 = vmatprep.subr.mxu0 0.0
  %1179 = vmatpush1.xpose.msra.mxu0 0.0
  %1180 = vmatprep.subr.mxu0 0.0
  %1181 = vmatpush1.xpose.msra.mxu0 0.0
  %1182 = vmatprep.subr.mxu0 0.0
  %1183 = vmatpush1.xpose.msra.mxu0 0.0
  %1184 = vmatprep.subr.mxu0 0.0
  %1185 = vmatpush1.xpose.msra.mxu0 0.0
  %1186 = vmatprep.subr.mxu0 0.0
  %1187 = vmatpush1.xpose.msra.mxu0 0.0
  %1188 = vmatprep.subr.mxu0 0.0
  %1189 = vmatpush1.xpose.msra.mxu0 0.0
  %1190 = vmatprep.subr.mxu0 0.0
  %1191 = vmatpush1.xpose.msra.mxu0 0.0
  %1192 = vmatprep.subr.mxu0 0.0
  %1193 = vmatpush1.xpose.msra.mxu0 0.0
  %1194 = vmatprep.subr.mxu0 0.0
  %1195 = vmatpush1.xpose.msra.mxu0 0.0
  %1196 = vmatprep.subr.mxu0 0.0
  %1197 = vmatpush1.xpose.msra.mxu0 0.0
  %1198 = vmatprep.subr.mxu0 0.0
  %1199 = vmatpush1.xpose.msra.mxu0 0.0
  %1200 = vmatprep.subr.mxu0 0.0
  %1201 = vmatpush1.xpose.msra.mxu0 0.0
  %1202 = vmatprep.subr.mxu0 0.0
  %1203 = vmatpush1.xpose.msra.mxu0 0.0
  %1204 = vmatprep.subr.mxu0 0.0
  %1205 = vmatpush1.xpose.msra.mxu0 0.0
  %1206 = vmatprep.subr.mxu0 0.0
  %1207 = vmatpush1.xpose.msra.mxu0 0.0
  %1208 = vmatprep.subr.mxu0 0.0
  %1209 = vmatpush1.xpose.msra.mxu0 0.0
  %1210 = vmatprep.subr.mxu0 0.0
  %1211 = vmatpush1.xpose.msra.mxu0 0.0
  %1212 = vmatprep.subr.mxu0 0.0
  %1213 = vmatpush1.xpose.msra.mxu0 0.0
  %1214 = vmatprep.subr.mxu0 0.0
  %1215 = vmatpush1.xpose.msra.mxu0 0.0
  %1216 = vmatprep.subr.mxu0 0.0
  %1217 = vmatpush1.xpose.msra.mxu0 0.0
  %1218 = vmatprep.subr.mxu0 0.0
  %1219 = vmatpush1.xpose.msra.mxu0 0.0
  %1220 = vmatprep.subr.mxu0 0.0
  %1221 = vmatpush1.xpose.msra.mxu0 0.0
  %1222 = vmatprep.subr.mxu0 0.0
  %1223 = vmatpush1.xpose.msra.mxu0 0.0
  %1224 = vmatprep.subr.mxu0 0.0
  %1225 = vmatpush1.xpose.msra.mxu0 0.0
  %1226 = vmatprep.subr.mxu0 0.0
  %1227 = vmatpush1.xpose.msra.mxu0 0.0
  %1228 = vmatprep.subr.mxu0 0.0
  %1229 = vmatpush1.xpose.msra.mxu0 0.0
  %1230 = vmatprep.subr.mxu0 0.0
  %1231 = vmatpush1.xpose.msra.mxu0 0.0
  %1232 = vmatprep.subr.mxu0 0.0
  %1233 = vmatpush1.xpose.msra.mxu0 0.0
  %1234 = vmatprep.subr.mxu0 0.0
  %1235 = vmatpush1.xpose.msra.mxu0 0.0
  %1236 = vmatprep.subr.mxu0 0.0
  %1237 = vmatpush1.xpose.msra.mxu0 0.0
  %1238 = vmatprep.mubr.f32.mxu0 0.0
  %1239 = vmatmul.mubr.f32.gmra.mrb[0].mxu0 %v1170
  %v1240 = vpop.f32.mrb[0].mxu0
  %v1241 = vadd.f32 0.0, %v1240
  %v1242 = vpop.f32.mrb[0].mxu0
  %1243 = vdwg.mxu0
  %v1244 = vsel %vm323, %v1241, -inf
  %1245 = vmax.xlane.f32.xlu0 %v1244
  %v1246 = vpop.xlane.xlu0 %1245
  %v1247 = vsub.f32 %v1241, %v1246
  %v1248 = vmul.f32 %v1247, 1.442695
  %v1249 = vpow.pop %v1248
  %v1250 = vsel %vm323, %v1249, 0.0
  %1251 = vadd.xlane.f32.xlu0 %v1250
  %v1252 = vpop.xlane.xlu0 %1251
  %1253 = vrot.lane.b32.xlu0 %v319, 88
  %v1254 = vpop.permute.xlu0 %1253
  %v1257 = vsel %vm323, %v1249, 0
  %1259 = vmatprep.subr.mxu0 0.0
  %1260 = vmatpush1.msra.mxu0 %v1254
  %1261 = vmatprep.subr.mxu0 0.0
  %1262 = vmatpush1.msra.mxu0 0.0
  %1263 = vmatprep.subr.mxu0 0.0
  %1264 = vmatpush1.msra.mxu0 0.0
  %1265 = vmatprep.subr.mxu0 0.0
  %1266 = vmatpush1.msra.mxu0 0.0
  %1267 = vmatprep.subr.mxu0 0.0
  %1268 = vmatpush1.msra.mxu0 0.0
  %1269 = vmatprep.subr.mxu0 0.0
  %1270 = vmatpush1.msra.mxu0 0.0
  %1271 = vmatprep.subr.mxu0 0.0
  %1272 = vmatpush1.msra.mxu0 0.0
  %1273 = vmatprep.subr.mxu0 0.0
  %1274 = vmatpush1.msra.mxu0 0.0
  %1275 = vmatprep.subr.mxu0 0.0
  %1276 = vmatpush1.msra.mxu0 0.0
  %1277 = vmatprep.subr.mxu0 0.0
  %1278 = vmatpush1.msra.mxu0 0.0
  %1279 = vmatprep.subr.mxu0 0.0
  %1280 = vmatpush1.msra.mxu0 0.0
  %1281 = vmatprep.subr.mxu0 0.0
  %1282 = vmatpush1.msra.mxu0 0.0
  %1283 = vmatprep.subr.mxu0 0.0
  %1284 = vmatpush1.msra.mxu0 0.0
  %1285 = vmatprep.subr.mxu0 0.0
  %1286 = vmatpush1.msra.mxu0 0.0
  %1287 = vmatprep.subr.mxu0 0.0
  %1288 = vmatpush1.msra.mxu0 0.0
  %1289 = vmatprep.subr.mxu0 0.0
  %1290 = vmatpush1.msra.mxu0 0.0
  %1291 = vmatprep.subr.mxu0 0.0
  %1292 = vmatpush1.msra.mxu0 0.0
  %1293 = vmatprep.subr.mxu0 0.0
  %1294 = vmatpush1.msra.mxu0 0.0
  %1295 = vmatprep.subr.mxu0 0.0
  %1296 = vmatpush1.msra.mxu0 0.0
  %1297 = vmatprep.subr.mxu0 0.0
  %1298 = vmatpush1.msra.mxu0 0.0
  %1299 = vmatprep.subr.mxu0 0.0
  %1300 = vmatpush1.msra.mxu0 0.0
  %1301 = vmatprep.subr.mxu0 0.0
  %1302 = vmatpush1.msra.mxu0 0.0
  %1303 = vmatprep.subr.mxu0 0.0
  %1304 = vmatpush1.msra.mxu0 0.0
  %1305 = vmatprep.subr.mxu0 0.0
  %1306 = vmatpush1.msra.mxu0 0.0
  %1307 = vmatprep.subr.mxu0 0.0
  %1308 = vmatpush1.msra.mxu0 0.0
  %1309 = vmatprep.subr.mxu0 0.0
  %1310 = vmatpush1.msra.mxu0 0.0
  %1311 = vmatprep.subr.mxu0 0.0
  %1312 = vmatpush1.msra.mxu0 0.0
  %1313 = vmatprep.subr.mxu0 0.0
  %1314 = vmatpush1.msra.mxu0 0.0
  %1315 = vmatprep.subr.mxu0 0.0
  %1316 = vmatpush1.msra.mxu0 0.0
  %1317 = vmatprep.subr.mxu0 0.0
  %1318 = vmatpush1.msra.mxu0 0.0
  %1319 = vmatprep.subr.mxu0 0.0
  %1320 = vmatpush1.msra.mxu0 0.0
  %1321 = vmatprep.subr.mxu0 0.0
  %1322 = vmatpush1.msra.mxu0 0.0
  %1323 = vmatprep.mubr.f32.mxu0 0.0
  %1324 = vmatmul.mubr.f32.gmra.mrb[0].mxu0 %v1257
  %v1325 = vpop.f32.mrb[0].mxu0
  %v1326 = vadd.f32 0.0, %v1325
  %v1327 = vpop.f32.mrb[0].mxu0
  %1328 = vdwg.mxu0
  %v1329 = vrcp.pop %v1252
  %v1330 = vmul.f32 %v1326, %v1329
  %1332 = vrot.lane.b32.xlu0 %v1330, 8
  %v1333 = vpop.permute.xlu0 %1332
  %1335 = vst.msk [vmem:[#allocation2 + $0x8] sm:$0xff] %vm657, %v1333
  %1336 = vrot.lane.b32.xlu0 %v1001, 112
  %v1337 = vpop.permute.xlu0 %1336
  %1338 = vrot.lane.b32.xlu0 %v319, 112
  %v1339 = vpop.permute.xlu0 %1338
  %v1340 = vsel %vm323, %v1337, 0
  %v1342 = vsel %vm323, %v1339, 0
  %1344 = vmatprep.subr.mxu0 0.0
  %1345 = vmatpush1.xpose.msra.mxu0 %v1342
  %1346 = vmatprep.subr.mxu0 0.0
  %1347 = vmatpush1.xpose.msra.mxu0 0.0
  %1348 = vmatprep.subr.mxu0 0.0
  %1349 = vmatpush1.xpose.msra.mxu0 0.0
  %1350 = vmatprep.subr.mxu0 0.0
  %1351 = vmatpush1.xpose.msra.mxu0 0.0
  %1352 = vmatprep.subr.mxu0 0.0
  %1353 = vmatpush1.xpose.msra.mxu0 0.0
  %1354 = vmatprep.subr.mxu0 0.0
  %1355 = vmatpush1.xpose.msra.mxu0 0.0
  %1356 = vmatprep.subr.mxu0 0.0
  %1357 = vmatpush1.xpose.msra.mxu0 0.0
  %1358 = vmatprep.subr.mxu0 0.0
  %1359 = vmatpush1.xpose.msra.mxu0 0.0
  %1360 = vmatprep.subr.mxu0 0.0
  %1361 = vmatpush1.xpose.msra.mxu0 0.0
  %1362 = vmatprep.subr.mxu0 0.0
  %1363 = vmatpush1.xpose.msra.mxu0 0.0
  %1364 = vmatprep.subr.mxu0 0.0
  %1365 = vmatpush1.xpose.msra.mxu0 0.0
  %1366 = vmatprep.subr.mxu0 0.0
  %1367 = vmatpush1.xpose.msra.mxu0 0.0
  %1368 = vmatprep.subr.mxu0 0.0
  %1369 = vmatpush1.xpose.msra.mxu0 0.0
  %1370 = vmatprep.subr.mxu0 0.0
  %1371 = vmatpush1.xpose.msra.mxu0 0.0
  %1372 = vmatprep.subr.mxu0 0.0
  %1373 = vmatpush1.xpose.msra.mxu0 0.0
  %1374 = vmatprep.subr.mxu0 0.0
  %1375 = vmatpush1.xpose.msra.mxu0 0.0
  %1376 = vmatprep.subr.mxu0 0.0
  %1377 = vmatpush1.xpose.msra.mxu0 0.0
  %1378 = vmatprep.subr.mxu0 0.0
  %1379 = vmatpush1.xpose.msra.mxu0 0.0
  %1380 = vmatprep.subr.mxu0 0.0
  %1381 = vmatpush1.xpose.msra.mxu0 0.0
  %1382 = vmatprep.subr.mxu0 0.0
  %1383 = vmatpush1.xpose.msra.mxu0 0.0
  %1384 = vmatprep.subr.mxu0 0.0
  %1385 = vmatpush1.xpose.msra.mxu0 0.0
  %1386 = vmatprep.subr.mxu0 0.0
  %1387 = vmatpush1.xpose.msra.mxu0 0.0
  %1388 = vmatprep.subr.mxu0 0.0
  %1389 = vmatpush1.xpose.msra.mxu0 0.0
  %1390 = vmatprep.subr.mxu0 0.0
  %1391 = vmatpush1.xpose.msra.mxu0 0.0
  %1392 = vmatprep.subr.mxu0 0.0
  %1393 = vmatpush1.xpose.msra.mxu0 0.0
  %1394 = vmatprep.subr.mxu0 0.0
  %1395 = vmatpush1.xpose.msra.mxu0 0.0
  %1396 = vmatprep.subr.mxu0 0.0
  %1397 = vmatpush1.xpose.msra.mxu0 0.0
  %1398 = vmatprep.subr.mxu0 0.0
  %1399 = vmatpush1.xpose.msra.mxu0 0.0
  %1400 = vmatprep.subr.mxu0 0.0
  %1401 = vmatpush1.xpose.msra.mxu0 0.0
  %1402 = vmatprep.subr.mxu0 0.0
  %1403 = vmatpush1.xpose.msra.mxu0 0.0
  %1404 = vmatprep.subr.mxu0 0.0
  %1405 = vmatpush1.xpose.msra.mxu0 0.0
  %1406 = vmatprep.subr.mxu0 0.0
  %1407 = vmatpush1.xpose.msra.mxu0 0.0
  %1408 = vmatprep.mubr.f32.mxu0 0.0
  %1409 = vmatmul.mubr.f32.gmra.mrb[0].mxu0 %v1340
  %v1410 = vpop.f32.mrb[0].mxu0
  %v1411 = vadd.f32 0.0, %v1410
  %v1412 = vpop.f32.mrb[0].mxu0
  %1413 = vdwg.mxu0
  %v1414 = vsel %vm323, %v1411, -inf
  %1415 = vmax.xlane.f32.xlu0 %v1414
  %v1416 = vpop.xlane.xlu0 %1415
  %v1417 = vsub.f32 %v1411, %v1416
  %v1418 = vmul.f32 %v1417, 1.442695
  %v1419 = vpow.pop %v1418
  %v1420 = vsel %vm323, %v1419, 0.0
  %1421 = vadd.xlane.f32.xlu0 %v1420
  %v1422 = vpop.xlane.xlu0 %1421
  %1423 = vrot.lane.b32.xlu0 %v319, 80
  %v1424 = vpop.permute.xlu0 %1423
  %v1427 = vsel %vm323, %v1419, 0
  %1429 = vmatprep.subr.mxu0 0.0
  %1430 = vmatpush1.msra.mxu0 %v1424
  %1431 = vmatprep.subr.mxu0 0.0
  %1432 = vmatpush1.msra.mxu0 0.0
  %1433 = vmatprep.subr.mxu0 0.0
  %1434 = vmatpush1.msra.mxu0 0.0
  %1435 = vmatprep.subr.mxu0 0.0
  %1436 = vmatpush1.msra.mxu0 0.0
  %1437 = vmatprep.subr.mxu0 0.0
  %1438 = vmatpush1.msra.mxu0 0.0
  %1439 = vmatprep.subr.mxu0 0.0
  %1440 = vmatpush1.msra.mxu0 0.0
  %1441 = vmatprep.subr.mxu0 0.0
  %1442 = vmatpush1.msra.mxu0 0.0
  %1443 = vmatprep.subr.mxu0 0.0
  %1444 = vmatpush1.msra.mxu0 0.0
  %1445 = vmatprep.subr.mxu0 0.0
  %1446 = vmatpush1.msra.mxu0 0.0
  %1447 = vmatprep.subr.mxu0 0.0
  %1448 = vmatpush1.msra.mxu0 0.0
  %1449 = vmatprep.subr.mxu0 0.0
  %1450 = vmatpush1.msra.mxu0 0.0
  %1451 = vmatprep.subr.mxu0 0.0
  %1452 = vmatpush1.msra.mxu0 0.0
  %1453 = vmatprep.subr.mxu0 0.0
  %1454 = vmatpush1.msra.mxu0 0.0
  %1455 = vmatprep.subr.mxu0 0.0
  %1456 = vmatpush1.msra.mxu0 0.0
  %1457 = vmatprep.subr.mxu0 0.0
  %1458 = vmatpush1.msra.mxu0 0.0
  %1459 = vmatprep.subr.mxu0 0.0
  %1460 = vmatpush1.msra.mxu0 0.0
  %1461 = vmatprep.subr.mxu0 0.0
  %1462 = vmatpush1.msra.mxu0 0.0
  %1463 = vmatprep.subr.mxu0 0.0
  %1464 = vmatpush1.msra.mxu0 0.0
  %1465 = vmatprep.subr.mxu0 0.0
  %1466 = vmatpush1.msra.mxu0 0.0
  %1467 = vmatprep.subr.mxu0 0.0
  %1468 = vmatpush1.msra.mxu0 0.0
  %1469 = vmatprep.subr.mxu0 0.0
  %1470 = vmatpush1.msra.mxu0 0.0
  %1471 = vmatprep.subr.mxu0 0.0
  %1472 = vmatpush1.msra.mxu0 0.0
  %1473 = vmatprep.subr.mxu0 0.0
  %1474 = vmatpush1.msra.mxu0 0.0
  %1475 = vmatprep.subr.mxu0 0.0
  %1476 = vmatpush1.msra.mxu0 0.0
  %1477 = vmatprep.subr.mxu0 0.0
  %1478 = vmatpush1.msra.mxu0 0.0
  %1479 = vmatprep.subr.mxu0 0.0
  %1480 = vmatpush1.msra.mxu0 0.0
  %1481 = vmatprep.subr.mxu0 0.0
  %1482 = vmatpush1.msra.mxu0 0.0
  %1483 = vmatprep.subr.mxu0 0.0
  %1484 = vmatpush1.msra.mxu0 0.0
  %1485 = vmatprep.subr.mxu0 0.0
  %1486 = vmatpush1.msra.mxu0 0.0
  %1487 = vmatprep.subr.mxu0 0.0
  %1488 = vmatpush1.msra.mxu0 0.0
  %1489 = vmatprep.subr.mxu0 0.0
  %1490 = vmatpush1.msra.mxu0 0.0
  %1491 = vmatprep.subr.mxu0 0.0
  %1492 = vmatpush1.msra.mxu0 0.0
  %1493 = vmatprep.mubr.f32.mxu0 0.0
  %1494 = vmatmul.mubr.f32.gmra.mrb[0].mxu0 %v1427
  %v1495 = vpop.f32.mrb[0].mxu0
  %v1496 = vadd.f32 0.0, %v1495
  %v1497 = vpop.f32.mrb[0].mxu0
  %1498 = vdwg.mxu0
  %v1499 = vrcp.pop %v1422
  %v1500 = vmul.f32 %v1496, %v1499
  %1502 = vrot.lane.b32.xlu0 %v1500, 16
  %v1503 = vpop.permute.xlu0 %1502
  %1505 = vst.msk [vmem:[#allocation2 + $0x8] sm:$0xff] %vm828, %v1503
  %1506 = vrot.lane.b32.xlu0 %v1001, 104
  %v1507 = vpop.permute.xlu0 %1506
  %1508 = vrot.lane.b32.xlu0 %v319, 104
  %v1509 = vpop.permute.xlu0 %1508
  %v1510 = vsel %vm323, %v1507, 0
  %v1512 = vsel %vm323, %v1509, 0
  %1514 = vmatprep.subr.mxu0 0.0
  %1515 = vmatpush1.xpose.msra.mxu0 %v1512
  %1516 = vmatprep.subr.mxu0 0.0
  %1517 = vmatpush1.xpose.msra.mxu0 0.0
  %1518 = vmatprep.subr.mxu0 0.0
  %1519 = vmatpush1.xpose.msra.mxu0 0.0
  %1520 = vmatprep.subr.mxu0 0.0
  %1521 = vmatpush1.xpose.msra.mxu0 0.0
  %1522 = vmatprep.subr.mxu0 0.0
  %1523 = vmatpush1.xpose.msra.mxu0 0.0
  %1524 = vmatprep.subr.mxu0 0.0
  %1525 = vmatpush1.xpose.msra.mxu0 0.0
  %1526 = vmatprep.subr.mxu0 0.0
  %1527 = vmatpush1.xpose.msra.mxu0 0.0
  %1528 = vmatprep.subr.mxu0 0.0
  %1529 = vmatpush1.xpose.msra.mxu0 0.0
  %1530 = vmatprep.subr.mxu0 0.0
  %1531 = vmatpush1.xpose.msra.mxu0 0.0
  %1532 = vmatprep.subr.mxu0 0.0
  %1533 = vmatpush1.xpose.msra.mxu0 0.0
  %1534 = vmatprep.subr.mxu0 0.0
  %1535 = vmatpush1.xpose.msra.mxu0 0.0
  %1536 = vmatprep.subr.mxu0 0.0
  %1537 = vmatpush1.xpose.msra.mxu0 0.0
  %1538 = vmatprep.subr.mxu0 0.0
  %1539 = vmatpush1.xpose.msra.mxu0 0.0
  %1540 = vmatprep.subr.mxu0 0.0
  %1541 = vmatpush1.xpose.msra.mxu0 0.0
  %1542 = vmatprep.subr.mxu0 0.0
  %1543 = vmatpush1.xpose.msra.mxu0 0.0
  %1544 = vmatprep.subr.mxu0 0.0
  %1545 = vmatpush1.xpose.msra.mxu0 0.0
  %1546 = vmatprep.subr.mxu0 0.0
  %1547 = vmatpush1.xpose.msra.mxu0 0.0
  %1548 = vmatprep.subr.mxu0 0.0
  %1549 = vmatpush1.xpose.msra.mxu0 0.0
  %1550 = vmatprep.subr.mxu0 0.0
  %1551 = vmatpush1.xpose.msra.mxu0 0.0
  %1552 = vmatprep.subr.mxu0 0.0
  %1553 = vmatpush1.xpose.msra.mxu0 0.0
  %1554 = vmatprep.subr.mxu0 0.0
  %1555 = vmatpush1.xpose.msra.mxu0 0.0
  %1556 = vmatprep.subr.mxu0 0.0
  %1557 = vmatpush1.xpose.msra.mxu0 0.0
  %1558 = vmatprep.subr.mxu0 0.0
  %1559 = vmatpush1.xpose.msra.mxu0 0.0
  %1560 = vmatprep.subr.mxu0 0.0
  %1561 = vmatpush1.xpose.msra.mxu0 0.0
  %1562 = vmatprep.subr.mxu0 0.0
  %1563 = vmatpush1.xpose.msra.mxu0 0.0
  %1564 = vmatprep.subr.mxu0 0.0
  %1565 = vmatpush1.xpose.msra.mxu0 0.0
  %1566 = vmatprep.subr.mxu0 0.0
  %1567 = vmatpush1.xpose.msra.mxu0 0.0
  %1568 = vmatprep.subr.mxu0 0.0
  %1569 = vmatpush1.xpose.msra.mxu0 0.0
  %1570 = vmatprep.subr.mxu0 0.0
  %1571 = vmatpush1.xpose.msra.mxu0 0.0
  %1572 = vmatprep.subr.mxu0 0.0
  %1573 = vmatpush1.xpose.msra.mxu0 0.0
  %1574 = vmatprep.subr.mxu0 0.0
  %1575 = vmatpush1.xpose.msra.mxu0 0.0
  %1576 = vmatprep.subr.mxu0 0.0
  %1577 = vmatpush1.xpose.msra.mxu0 0.0
  %1578 = vmatprep.mubr.f32.mxu0 0.0
  %1579 = vmatmul.mubr.f32.gmra.mrb[0].mxu0 %v1510
  %v1580 = vpop.f32.mrb[0].mxu0
  %v1581 = vadd.f32 0.0, %v1580
  %v1582 = vpop.f32.mrb[0].mxu0
  %1583 = vdwg.mxu0
  %v1584 = vsel %vm323, %v1581, -inf
  %1585 = vmax.xlane.f32.xlu0 %v1584
  %v1586 = vpop.xlane.xlu0 %1585
  %v1587 = vsub.f32 %v1581, %v1586
  %v1588 = vmul.f32 %v1587, 1.442695
  %v1589 = vpow.pop %v1588
  %v1590 = vsel %vm323, %v1589, 0.0
  %1591 = vadd.xlane.f32.xlu0 %v1590
  %v1592 = vpop.xlane.xlu0 %1591
  %1593 = vrot.lane.b32.xlu0 %v319, 72
  %v1594 = vpop.permute.xlu0 %1593
  %v1597 = vsel %vm323, %v1589, 0
  %1599 = vmatprep.subr.mxu0 0.0
  %1600 = vmatpush1.msra.mxu0 %v1594
  %1601 = vmatprep.subr.mxu0 0.0
  %1602 = vmatpush1.msra.mxu0 0.0
  %1603 = vmatprep.subr.mxu0 0.0
  %1604 = vmatpush1.msra.mxu0 0.0
  %1605 = vmatprep.subr.mxu0 0.0
  %1606 = vmatpush1.msra.mxu0 0.0
  %1607 = vmatprep.subr.mxu0 0.0
  %1608 = vmatpush1.msra.mxu0 0.0
  %1609 = vmatprep.subr.mxu0 0.0
  %1610 = vmatpush1.msra.mxu0 0.0
  %1611 = vmatprep.subr.mxu0 0.0
  %1612 = vmatpush1.msra.mxu0 0.0
  %1613 = vmatprep.subr.mxu0 0.0
  %1614 = vmatpush1.msra.mxu0 0.0
  %1615 = vmatprep.subr.mxu0 0.0
  %1616 = vmatpush1.msra.mxu0 0.0
  %1617 = vmatprep.subr.mxu0 0.0
  %1618 = vmatpush1.msra.mxu0 0.0
  %1619 = vmatprep.subr.mxu0 0.0
  %1620 = vmatpush1.msra.mxu0 0.0
  %1621 = vmatprep.subr.mxu0 0.0
  %1622 = vmatpush1.msra.mxu0 0.0
  %1623 = vmatprep.subr.mxu0 0.0
  %1624 = vmatpush1.msra.mxu0 0.0
  %1625 = vmatprep.subr.mxu0 0.0
  %1626 = vmatpush1.msra.mxu0 0.0
  %1627 = vmatprep.subr.mxu0 0.0
  %1628 = vmatpush1.msra.mxu0 0.0
  %1629 = vmatprep.subr.mxu0 0.0
  %1630 = vmatpush1.msra.mxu0 0.0
  %1631 = vmatprep.subr.mxu0 0.0
  %1632 = vmatpush1.msra.mxu0 0.0
  %1633 = vmatprep.subr.mxu0 0.0
  %1634 = vmatpush1.msra.mxu0 0.0
  %1635 = vmatprep.subr.mxu0 0.0
  %1636 = vmatpush1.msra.mxu0 0.0
  %1637 = vmatprep.subr.mxu0 0.0
  %1638 = vmatpush1.msra.mxu0 0.0
  %1639 = vmatprep.subr.mxu0 0.0
  %1640 = vmatpush1.msra.mxu0 0.0
  %1641 = vmatprep.subr.mxu0 0.0
  %1642 = vmatpush1.msra.mxu0 0.0
  %1643 = vmatprep.subr.mxu0 0.0
  %1644 = vmatpush1.msra.mxu0 0.0
  %1645 = vmatprep.subr.mxu0 0.0
  %1646 = vmatpush1.msra.mxu0 0.0
  %1647 = vmatprep.subr.mxu0 0.0
  %1648 = vmatpush1.msra.mxu0 0.0
  %1649 = vmatprep.subr.mxu0 0.0
  %1650 = vmatpush1.msra.mxu0 0.0
  %1651 = vmatprep.subr.mxu0 0.0
  %1652 = vmatpush1.msra.mxu0 0.0
  %1653 = vmatprep.subr.mxu0 0.0
  %1654 = vmatpush1.msra.mxu0 0.0
  %1655 = vmatprep.subr.mxu0 0.0
  %1656 = vmatpush1.msra.mxu0 0.0
  %1657 = vmatprep.subr.mxu0 0.0
  %1658 = vmatpush1.msra.mxu0 0.0
  %1659 = vmatprep.subr.mxu0 0.0
  %1660 = vmatpush1.msra.mxu0 0.0
  %1661 = vmatprep.subr.mxu0 0.0
  %1662 = vmatpush1.msra.mxu0 0.0
  %1663 = vmatprep.mubr.f32.mxu0 0.0
  %1664 = vmatmul.mubr.f32.gmra.mrb[0].mxu0 %v1597
  %v1665 = vpop.f32.mrb[0].mxu0
  %v1666 = vadd.f32 0.0, %v1665
  %v1667 = vpop.f32.mrb[0].mxu0
  %1668 = vdwg.mxu0
  %v1669 = vrcp.pop %v1592
  %v1670 = vmul.f32 %v1666, %v1669
  %1672 = vrot.lane.b32.xlu0 %v1670, 24
  %v1673 = vpop.permute.xlu0 %1672
  %1675 = vst.msk [vmem:[#allocation2 + $0x8] sm:$0xff] %vm999, %v1673
  %v1676 = vld [vmem:[#allocation2] sm:$0xff]
  %v1677 = vld [vmem:[#allocation2 + $0x8] sm:$0xff]
  %v1678 = vld [vmem:[%s7] sm:$0xff]
  %v1679 = vld [vmem:[%s7 + $0x8] sm:$0xff]
  %v1680 = vld [vmem:[%s7 + $0x10] sm:$0xff]
  %v1681 = vld [vmem:[%s7 + $0x18] sm:$0xff]
  %v1683 = vsel %vm54, %v1676, 0
  %v1686 = vsel %vm54, %v1677, 0
  %v1689 = vsel %vm54, %v1678, 0
  %v1692 = vsel %vm54, %v1679, 0
  %v1695 = vsel %vm54, %v1680, 0
  %v1698 = vsel %vm54, %v1681, 0
  %1700 = vmatprep.subr.mxu0 0.0
  %1701 = vmatpush1.xpose.msra.mxu0 %v1689
  %1702 = vmatprep.subr.mxu0 0.0
  %1703 = vmatpush1.xpose.msra.mxu0 %v1692
  %1704 = vmatprep.subr.mxu0 0.0
  %1705 = vmatpush1.xpose.msra.mxu0 %v1695
  %1706 = vmatprep.subr.mxu0 0.0
  %1707 = vmatpush1.xpose.msra.mxu0 %v1698
  %1708 = vmatprep.subr.mxu0 0.0
  %1709 = vmatpush1.xpose.msra.mxu0 0.0
  %1710 = vmatprep.subr.mxu0 0.0
  %1711 = vmatpush1.xpose.msra.mxu0 0.0
  %1712 = vmatprep.subr.mxu0 0.0
  %1713 = vmatpush1.xpose.msra.mxu0 0.0
  %1714 = vmatprep.subr.mxu0 0.0
  %1715 = vmatpush1.xpose.msra.mxu0 0.0
  %1716 = vmatprep.subr.mxu0 0.0
  %1717 = vmatpush1.xpose.msra.mxu0 0.0
  %1718 = vmatprep.subr.mxu0 0.0
  %1719 = vmatpush1.xpose.msra.mxu0 0.0
  %1720 = vmatprep.subr.mxu0 0.0
  %1721 = vmatpush1.xpose.msra.mxu0 0.0
  %1722 = vmatprep.subr.mxu0 0.0
  %1723 = vmatpush1.xpose.msra.mxu0 0.0
  %1724 = vmatprep.subr.mxu0 0.0
  %1725 = vmatpush1.xpose.msra.mxu0 0.0
  %1726 = vmatprep.subr.mxu0 0.0
  %1727 = vmatpush1.xpose.msra.mxu0 0.0
  %1728 = vmatprep.subr.mxu0 0.0
  %1729 = vmatpush1.xpose.msra.mxu0 0.0
  %1730 = vmatprep.subr.mxu0 0.0
  %1731 = vmatpush1.xpose.msra.mxu0 0.0
  %1732 = vmatprep.subr.mxu0 0.0
  %1733 = vmatpush1.xpose.msra.mxu0 0.0
  %1734 = vmatprep.subr.mxu0 0.0
  %1735 = vmatpush1.xpose.msra.mxu0 0.0
  %1736 = vmatprep.subr.mxu0 0.0
  %1737 = vmatpush1.xpose.msra.mxu0 0.0
  %1738 = vmatprep.subr.mxu0 0.0
  %1739 = vmatpush1.xpose.msra.mxu0 0.0
  %1740 = vmatprep.subr.mxu0 0.0
  %1741 = vmatpush1.xpose.msra.mxu0 0.0
  %1742 = vmatprep.subr.mxu0 0.0
  %1743 = vmatpush1.xpose.msra.mxu0 0.0
  %1744 = vmatprep.subr.mxu0 0.0
  %1745 = vmatpush1.xpose.msra.mxu0 0.0
  %1746 = vmatprep.subr.mxu0 0.0
  %1747 = vmatpush1.xpose.msra.mxu0 0.0
  %1748 = vmatprep.subr.mxu0 0.0
  %1749 = vmatpush1.xpose.msra.mxu0 0.0
  %1750 = vmatprep.subr.mxu0 0.0
  %1751 = vmatpush1.xpose.msra.mxu0 0.0
  %1752 = vmatprep.subr.mxu0 0.0
  %1753 = vmatpush1.xpose.msra.mxu0 0.0
  %1754 = vmatprep.subr.mxu0 0.0
  %1755 = vmatpush1.xpose.msra.mxu0 0.0
  %1756 = vmatprep.subr.mxu0 0.0
  %1757 = vmatpush1.xpose.msra.mxu0 0.0
  %1758 = vmatprep.subr.mxu0 0.0
  %1759 = vmatpush1.xpose.msra.mxu0 0.0
  %1760 = vmatprep.subr.mxu0 0.0
  %1761 = vmatpush1.xpose.msra.mxu0 0.0
  %1762 = vmatprep.subr.mxu0 0.0
  %1763 = vmatpush1.xpose.msra.mxu0 0.0
  %1764 = vmatprep.mubr.f32.mxu0 0.0
  %1765 = vmatmul.mubr.f32.gmra.mrb[0].mxu0 %v1683
  %v1766 = vpop.f32.mrb[0].mxu0
  %v1767 = vadd.f32 0.0, %v1766
  %v1768 = vpop.f32.mrb[0].mxu0
  %1769 = vmatprep.mubr.f32.mxu0 0.0
  %1770 = vmatmul.mubr.f32.gmra.mrb[0].mxu0 %v1686
  %v1771 = vpop.f32.mrb[0].mxu0
  %v1772 = vadd.f32 0.0, %v1771
  %v1773 = vpop.f32.mrb[0].mxu0
  %1774 = vdwg.mxu0
  %v1775 = vadd.f32 %v50, %v1767
  %v1776 = vadd.f32 %v51, %v1772
  %v1777 = vld [vmem:[%s8] sm:$0x1]
  %v1779 = vlaneseq
  %v1780 = vshrl.u32 %v1779, 7
  %v1781 = vsub.s32 0, %v1780
  %v1782 = vrot.slane %v1777, %v1781
  %v1784 = vadd.f32 %v1775, %v1782
  %v1785 = vadd.f32 %v1776, %v1782
  %v1786 = vld [vmem:[%s9] sm:$0x1]
  %v1787 = vld [vmem:[%s10] sm:$0x1]
  %v1788 = vsel %vm54, %v1784, 0.0
  %1789 = vadd.xlane.f32.xlu0 %v1788
  %v1790 = vpop.xlane.xlu0 %1789
  %v1791 = vsel %vm54, %v1785, 0.0
  %1792 = vadd.xlane.f32.xlu0 %v1791
  %v1793 = vpop.xlane.xlu0 %1792
  %v1794 = vmul.f32 %v1790, %v61
  %v1795 = vmul.f32 %v1793, %v61
  %v1796 = vsub.f32 %v1784, %v1794
  %v1797 = vsub.f32 %v1785, %v1795
  %v1798 = vmul.f32 %v1796, %v1796
  %v1799 = vmul.f32 %v1797, %v1797
  %v1800 = vsel %vm54, %v1798, 0.0
  %1801 = vadd.xlane.f32.xlu0 %v1800
  %v1802 = vpop.xlane.xlu0 %1801
  %v1803 = vsel %vm54, %v1799, 0.0
  %1804 = vadd.xlane.f32.xlu0 %v1803
  %v1805 = vpop.xlane.xlu0 %1804
  %v1806 = vmul.f32 %v1802, %v61
  %v1807 = vmul.f32 %v1805, %v61
  %v1808 = vadd.f32 %v1806, 1e-05
  %v1809 = vadd.f32 %v1807, 1e-05
  %v1810 = vrsqrt.pop %v1808
  %v1811 = vrsqrt.pop %v1809
  %v1812 = vmul.f32 %v1796, %v1810
  %v1813 = vmul.f32 %v1797, %v1811
  %v1815 = vlaneseq
  %v1816 = vshrl.u32 %v1815, 7
  %v1817 = vsub.s32 0, %v1816
  %v1818 = vrot.slane %v1786, %v1817
  %v1820 = vmul.f32 %v1812, %v1818
  %v1821 = vmul.f32 %v1813, %v1818
  %v1823 = vlaneseq
  %v1824 = vshrl.u32 %v1823, 7
  %v1825 = vsub.s32 0, %v1824
  %v1826 = vrot.slane %v1787, %v1825
  %v1828 = vadd.f32 %v1820, %v1826
  %v1829 = vadd.f32 %v1821, %v1826
  %v1830 = vld [vmem:[%s11] sm:$0xff]
  %v1831 = vld [vmem:[%s11 + $0x8] sm:$0xff]
  %v1832 = vld [vmem:[%s11 + $0x10] sm:$0xff]
  %v1833 = vld [vmem:[%s11 + $0x18] sm:$0xff]
  %v1834 = vld [vmem:[%s11 + $0x20] sm:$0xff]
  %v1835 = vld [vmem:[%s11 + $0x28] sm:$0xff]
  %v1836 = vld [vmem:[%s11 + $0x30] sm:$0xff]
  %v1837 = vld [vmem:[%s11 + $0x38] sm:$0xff]
  %v1838 = vld [vmem:[%s12] sm:$0x1]
  %v1840 = vlaneseq
  %v1841 = vshrl.u32 %v1840, 7
  %v1842 = vsub.s32 0, %v1841
  %v1843 = vrot.slane %v1838, %v1842
  %v1846 = vsel %vm54, %v1828, 0
  %v1849 = vsel %vm54, %v1829, 0
  %v1852 = vsel %vm54, %v1830, 0
  %v1855 = vsel %vm54, %v1831, 0
  %v1858 = vsel %vm54, %v1832, 0
  %v1861 = vsel %vm54, %v1833, 0
  %v1864 = vsel %vm54, %v1834, 0
  %v1867 = vsel %vm54, %v1835, 0
  %v1870 = vsel %vm54, %v1836, 0
  %v1873 = vsel %vm54, %v1837, 0
  %1875 = vmatprep.subr.mxu0 0.0
  %1876 = vmatpush1.xpose.msra.mxu0 %v1852
  %1877 = vmatprep.subr.mxu0 0.0
  %1878 = vmatpush1.xpose.msra.mxu0 %v1855
  %1879 = vmatprep.subr.mxu0 0.0
  %1880 = vmatpush1.xpose.msra.mxu0 %v1858
  %1881 = vmatprep.subr.mxu0 0.0
  %1882 = vmatpush1.xpose.msra.mxu0 %v1861
  %1883 = vmatprep.subr.mxu0 0.0
  %1884 = vmatpush1.xpose.msra.mxu0 %v1864
  %1885 = vmatprep.subr.mxu0 0.0
  %1886 = vmatpush1.xpose.msra.mxu0 %v1867
  %1887 = vmatprep.subr.mxu0 0.0
  %1888 = vmatpush1.xpose.msra.mxu0 %v1870
  %1889 = vmatprep.subr.mxu0 0.0
  %1890 = vmatpush1.xpose.msra.mxu0 %v1873
  %1891 = vmatprep.subr.mxu0 0.0
  %1892 = vmatpush1.xpose.msra.mxu0 0.0
  %1893 = vmatprep.subr.mxu0 0.0
  %1894 = vmatpush1.xpose.msra.mxu0 0.0
  %1895 = vmatprep.subr.mxu0 0.0
  %1896 = vmatpush1.xpose.msra.mxu0 0.0
  %1897 = vmatprep.subr.mxu0 0.0
  %1898 = vmatpush1.xpose.msra.mxu0 0.0
  %1899 = vmatprep.subr.mxu0 0.0
  %1900 = vmatpush1.xpose.msra.mxu0 0.0
  %1901 = vmatprep.subr.mxu0 0.0
  %1902 = vmatpush1.xpose.msra.mxu0 0.0
  %1903 = vmatprep.subr.mxu0 0.0
  %1904 = vmatpush1.xpose.msra.mxu0 0.0
  %1905 = vmatprep.subr.mxu0 0.0
  %1906 = vmatpush1.xpose.msra.mxu0 0.0
  %1907 = vmatprep.subr.mxu0 0.0
  %1908 = vmatpush1.xpose.msra.mxu0 0.0
  %1909 = vmatprep.subr.mxu0 0.0
  %1910 = vmatpush1.xpose.msra.mxu0 0.0
  %1911 = vmatprep.subr.mxu0 0.0
  %1912 = vmatpush1.xpose.msra.mxu0 0.0
  %1913 = vmatprep.subr.mxu0 0.0
  %1914 = vmatpush1.xpose.msra.mxu0 0.0
  %1915 = vmatprep.subr.mxu0 0.0
  %1916 = vmatpush1.xpose.msra.mxu0 0.0
  %1917 = vmatprep.subr.mxu0 0.0
  %1918 = vmatpush1.xpose.msra.mxu0 0.0
  %1919 = vmatprep.subr.mxu0 0.0
  %1920 = vmatpush1.xpose.msra.mxu0 0.0
  %1921 = vmatprep.subr.mxu0 0.0
  %1922 = vmatpush1.xpose.msra.mxu0 0.0
  %1923 = vmatprep.subr.mxu0 0.0
  %1924 = vmatpush1.xpose.msra.mxu0 0.0
  %1925 = vmatprep.subr.mxu0 0.0
  %1926 = vmatpush1.xpose.msra.mxu0 0.0
  %1927 = vmatprep.subr.mxu0 0.0
  %1928 = vmatpush1.xpose.msra.mxu0 0.0
  %1929 = vmatprep.subr.mxu0 0.0
  %1930 = vmatpush1.xpose.msra.mxu0 0.0
  %1931 = vmatprep.subr.mxu0 0.0
  %1932 = vmatpush1.xpose.msra.mxu0 0.0
  %1933 = vmatprep.subr.mxu0 0.0
  %1934 = vmatpush1.xpose.msra.mxu0 0.0
  %1935 = vmatprep.subr.mxu0 0.0
  %1936 = vmatpush1.xpose.msra.mxu0 0.0
  %1937 = vmatprep.subr.mxu0 0.0
  %1938 = vmatpush1.xpose.msra.mxu0 0.0
  %1939 = vmatprep.mubr.f32.mxu0 0.0
  %1940 = vmatmul.mubr.f32.gmra.mrb[0].mxu0 %v1846
  %v1941 = vpop.f32.mrb[0].mxu0
  %v1942 = vadd.f32 %v1843, %v1941
  %v1943 = vpop.f32.mrb[0].mxu0
  %1944 = vmatprep.mubr.f32.mxu0 0.0
  %1945 = vmatmul.mubr.f32.gmra.mrb[0].mxu0 %v1849
  %v1946 = vpop.f32.mrb[0].mxu0
  %v1947 = vadd.f32 %v1843, %v1946
  %v1948 = vpop.f32.mrb[0].mxu0
  %1949 = vdwg.mxu0
  %v1950 = vmul.f32 %v1942, 0.5
  %v1951 = vmul.f32 %v1947, 0.5
  %v1952 = vmul.f32 %v1942, 0.70710677
  %v1953 = vmul.f32 %v1947, 0.70710677
  %v1954 = verf.f32.pop %v1952
  %v1955 = verf.f32.pop %v1953
  %v1956 = vadd.f32 %v1954, 1.0
  %v1957 = vadd.f32 %v1955, 1.0
  %v1958 = vmul.f32 %v1950, %v1956
  %v1959 = vmul.f32 %v1951, %v1957
  %v1960 = vld [vmem:[%s13] sm:$0xff]
  %v1961 = vld [vmem:[%s13 + $0x8] sm:$0xff]
  %v1962 = vld [vmem:[%s13 + $0x10] sm:$0xff]
  %v1963 = vld [vmem:[%s13 + $0x18] sm:$0xff]
  %v1964 = vld [vmem:[%s14] sm:$0x1]
  %v1966 = vlaneseq
  %v1967 = vshrl.u32 %v1966, 7
  %v1968 = vsub.s32 0, %v1967
  %v1969 = vrot.slane %v1964, %v1968
  %vm1971 = vcmask 523264
  %v1973 = vsel %vm1971, %v1958, 0
  %v1976 = vsel %vm1971, %v1959, 0
  %v1979 = vsel %vm1971, %v1960, 0
  %v1982 = vsel %vm1971, %v1961, 0
  %v1985 = vsel %vm1971, %v1962, 0
  %v1988 = vsel %vm1971, %v1963, 0
  %1990 = vmatprep.subr.mxu0 0.0
  %1991 = vmatpush1.xpose.msra.mxu0 %v1979
  %1992 = vmatprep.subr.mxu0 0.0
  %1993 = vmatpush1.xpose.msra.mxu0 %v1982
  %1994 = vmatprep.subr.mxu0 0.0
  %1995 = vmatpush1.xpose.msra.mxu0 %v1985
  %1996 = vmatprep.subr.mxu0 0.0
  %1997 = vmatpush1.xpose.msra.mxu0 %v1988
  %1998 = vmatprep.subr.mxu0 0.0
  %1999 = vmatpush1.xpose.msra.mxu0 0.0
  %2000 = vmatprep.subr.mxu0 0.0
  %2001 = vmatpush1.xpose.msra.mxu0 0.0
  %2002 = vmatprep.subr.mxu0 0.0
  %2003 = vmatpush1.xpose.msra.mxu0 0.0
  %2004 = vmatprep.subr.mxu0 0.0
  %2005 = vmatpush1.xpose.msra.mxu0 0.0
  %2006 = vmatprep.subr.mxu0 0.0
  %2007 = vmatpush1.xpose.msra.mxu0 0.0
  %2008 = vmatprep.subr.mxu0 0.0
  %2009 = vmatpush1.xpose.msra.mxu0 0.0
  %2010 = vmatprep.subr.mxu0 0.0
  %2011 = vmatpush1.xpose.msra.mxu0 0.0
  %2012 = vmatprep.subr.mxu0 0.0
  %2013 = vmatpush1.xpose.msra.mxu0 0.0
  %2014 = vmatprep.subr.mxu0 0.0
  %2015 = vmatpush1.xpose.msra.mxu0 0.0
  %2016 = vmatprep.subr.mxu0 0.0
  %2017 = vmatpush1.xpose.msra.mxu0 0.0
  %2018 = vmatprep.subr.mxu0 0.0
  %2019 = vmatpush1.xpose.msra.mxu0 0.0
  %2020 = vmatprep.subr.mxu0 0.0
  %2021 = vmatpush1.xpose.msra.mxu0 0.0
  %2022 = vmatprep.subr.mxu0 0.0
  %2023 = vmatpush1.xpose.msra.mxu0 0.0
  %2024 = vmatprep.subr.mxu0 0.0
  %2025 = vmatpush1.xpose.msra.mxu0 0.0
  %2026 = vmatprep.subr.mxu0 0.0
  %2027 = vmatpush1.xpose.msra.mxu0 0.0
  %2028 = vmatprep.subr.mxu0 0.0
  %2029 = vmatpush1.xpose.msra.mxu0 0.0
  %2030 = vmatprep.subr.mxu0 0.0
  %2031 = vmatpush1.xpose.msra.mxu0 0.0
  %2032 = vmatprep.subr.mxu0 0.0
  %2033 = vmatpush1.xpose.msra.mxu0 0.0
  %2034 = vmatprep.subr.mxu0 0.0
  %2035 = vmatpush1.xpose.msra.mxu0 0.0
  %2036 = vmatprep.subr.mxu0 0.0
  %2037 = vmatpush1.xpose.msra.mxu0 0.0
  %2038 = vmatprep.subr.mxu0 0.0
  %2039 = vmatpush1.xpose.msra.mxu0 0.0
  %2040 = vmatprep.subr.mxu0 0.0
  %2041 = vmatpush1.xpose.msra.mxu0 0.0
  %2042 = vmatprep.subr.mxu0 0.0
  %2043 = vmatpush1.xpose.msra.mxu0 0.0
  %2044 = vmatprep.subr.mxu0 0.0
  %2045 = vmatpush1.xpose.msra.mxu0 0.0
  %2046 = vmatprep.subr.mxu0 0.0
  %2047 = vmatpush1.xpose.msra.mxu0 0.0
  %2048 = vmatprep.subr.mxu0 0.0
  %2049 = vmatpush1.xpose.msra.mxu0 0.0
  %2050 = vmatprep.subr.mxu0 0.0
  %2051 = vmatpush1.xpose.msra.mxu0 0.0
  %2052 = vmatprep.subr.mxu0 0.0
  %2053 = vmatpush1.xpose.msra.mxu0 0.0
  %2054 = vmatprep.mubr.f32.mxu0 0.0
  %2055 = vmatmul.mubr.f32.gmra.mrb[0].mxu0 %v1973
  %v2056 = vpop.f32.mrb[0].mxu0
  %v2057 = vadd.f32 %v1969, %v2056
  %v2058 = vpop.f32.mrb[0].mxu0
  %2059 = vmatprep.mubr.f32.mxu0 0.0
  %2060 = vmatmul.mubr.f32.gmra.mrb[0].mxu0 %v1976
  %v2061 = vpop.f32.mrb[0].mxu0
  %v2062 = vadd.f32 %v1969, %v2061
  %v2063 = vpop.f32.mrb[0].mxu0
  %2064 = vdwg.mxu0
  %v2065 = vmul.f32 %v2057, 0.5
  %v2066 = vmul.f32 %v2062, 0.5
  %v2067 = vmul.f32 %v2057, 0.70710677
  %v2068 = vmul.f32 %v2062, 0.70710677
  %v2069 = verf.f32.pop %v2067
  %v2070 = verf.f32.pop %v2068
  %v2071 = vadd.f32 %v2069, 1.0
  %v2072 = vadd.f32 %v2070, 1.0
  %v2073 = vmul.f32 %v2065, %v2071
  %v2074 = vmul.f32 %v2066, %v2072
  %v2075 = vadd.f32 %v1784, %v2073
  %v2076 = vadd.f32 %v1785, %v2074
  %2077 = vst.msk [vmem:[%s15] sm:$0xff] %vm54, %v2075
  %2078 = vst.msk [vmem:[%s15 + $0x8] sm:$0xff] %vm54, %v2076
  // Predicated region
  $region62: #{transformer_block.1} parent=0 // pred_check
    _
  $region63: #{transformer_block.1} parent=0 // pred_check_branch
    %2080 = sbr.rel (0) target = $region65
  $region64: #{transformer_block.1} parent=0 // pred_region
    _
  $region65: #{transformer_block.1} parent=0 // pred_fallthru
    _
  // Predicated region
  $region66: #{transformer_block.1} parent=0 // pred_check
    _
  $region67: #{transformer_block.1} parent=0 // pred_check_branch
    %2082 = sbr.rel (0) target = $region69
  $region68: #{transformer_block.1} parent=0 // pred_region
    _
  $region69: #{transformer_block.1} parent=0 // pred_fallthru
    _

</llo_original>
